<compile_context>
chip_gen: v5e
topology: v5e:2x2
jax: 0.10.0
libtpu: 0.0.40
codegen_flags: <defaults>
</compile_context>

<pallas_src>
import functools

import numpy as np

import jax
import jax.numpy as jnp
from jax import lax
from jax.experimental import pallas as pl
from jax.experimental.pallas import tpu as pltpu


def _double_res_conv_kernel(x_ref, w1_ref, b1_ref, w2_ref, b2_ref, o_ref, *, H, W):
    """One batch block per grid step.

    x_ref  : (Bblk, C, H*W)  input tile (VMEM), channels on sublanes, pixels on lanes
    w1_ref : (9, C, C)       conv1 weights, tap-major (t = kh*3 + kw), (Cout, Cin)
    b1_ref : (C, 1)          conv1 bias (broadcast over lanes)
    w2_ref : (9, C, C)       conv2 weights
    b2_ref : (C, 1)          conv2 bias
    o_ref  : (Bblk, C, H*W)  output tile (VMEM), lane-dense
    """
    Bblk, C, HW = x_ref.shape

    # Flat pixel index n = h*W + w and column index w (built without integer
    # div/mod: lane iota + jnp.tile).  Computed once, reused by both convs and
    # every batch element.
    lane = lax.broadcasted_iota(jnp.int32, (1, HW), 1)                       # n
    col = jnp.tile(lax.broadcasted_iota(jnp.int32, (1, W), 1), (1, H))       # n mod W

    # Tap t = (dh+1)*3 + (dw+1) == kh*3 + kw  (matches the weight packing).
    offsets = [(dh, dw) for dh in (-1, 0, 1) for dw in (-1, 0, 1)]
    masks = []
    for dh, dw in offsets:
        conds = []
        if dh < 0:
            conds.append(lane >= (-dh) * W)          # h + dh >= 0
        if dh > 0:
            conds.append(lane < (H - dh) * W)        # h + dh <  H
        if dw < 0:
            conds.append(col >= -dw)                 # w + dw >= 0
        if dw > 0:
            conds.append(col < W - dw)               # w + dw <  W
        m = None
        for c in conds:
            m = c if m is None else (m & c)
        masks.append(m)

    def conv3x3_bias_relu(inp, w_ref, b_ref):
        """inp: (C, H*W) f32 -> (C, H*W) f32; zero-padded 3x3 conv + bias + ReLU."""
        acc = None
        for t, (dh, dw) in enumerate(offsets):
            off = dh * W + dw
            if off == 0:
                s = inp
            else:
                # shifted[n] = inp[n + off]; wrap-around lanes are masked below.
                s = pltpu.roll(inp, shift=(-off) % HW, axis=1)
            if masks[t] is not None:
                s = jnp.where(masks[t], s, 0.0)
            d = jnp.dot(w_ref[t], s, preferred_element_type=jnp.float32)     # (C, HW)
            acc = d if acc is None else acc + d
        return jnp.maximum(acc + b_ref[...], 0.0)

    for bi in range(Bblk):
        x_img = x_ref[bi].astype(jnp.float32)                                # (C, HW)
        h1 = conv3x3_bias_relu(x_img, w1_ref, b1_ref)
        h2 = conv3x3_bias_relu(h1, w2_ref, b2_ref)
        o_ref[bi] = (h2 + x_img).astype(o_ref.dtype)                         # residual


def double_residual_conv(x_nchw, w1, b1, w2, b2, *, block_b=None):
    """x_nchw: (B, C, H, W); w1, w2: (C, C, 3, 3) OIHW; b1, b2: (C,)."""
    B, C, H, W = x_nchw.shape
    HW = H * W

    if block_b is None:
        # Batch-block: few fat grid steps for small images (amortize per-step
        # pipeline overhead); cap so larger batches still split across steps.
        block_b = next(cand for cand in (8, 4, 2, 1) if B % cand == 0)
    assert B % block_b == 0

    # Free contiguous reshape; channels stay on sublanes, pixels on lanes.
    x_flat = x_nchw.reshape(B, C, HW)

    def pack_weight(w_oihw):
        # OIHW -> (kh, kw, O, I) -> (9, O, I); tap index t = kh*3 + kw.
        return jnp.transpose(w_oihw, (2, 3, 0, 1)).reshape(9, C, C)

    w1p, w2p = pack_weight(w1), pack_weight(w2)
    b1p, b2p = b1.reshape(C, 1), b2.reshape(C, 1)

    kernel = functools.partial(_double_res_conv_kernel, H=H, W=W)

    out_flat = pl.pallas_call(
        kernel,
        out_shape=jax.ShapeDtypeStruct((B, C, HW), x_nchw.dtype),
        grid_spec=pltpu.PrefetchScalarGridSpec(
            num_scalar_prefetch=0,
            grid=(B // block_b,),
            in_specs=[
                pl.BlockSpec((block_b, C, HW), lambda i: (i, 0, 0)),
                pl.BlockSpec((9, C, C), lambda i: (0, 0, 0)),
                pl.BlockSpec((C, 1), lambda i: (0, 0)),
                pl.BlockSpec((9, C, C), lambda i: (0, 0, 0)),
                pl.BlockSpec((C, 1), lambda i: (0, 0)),
            ],
            out_specs=pl.BlockSpec((block_b, C, HW), lambda i: (i, 0, 0)),
        ),
        compiler_params=pltpu.CompilerParams(
            dimension_semantics=("parallel",),
            # No explicit vmem_limit_bytes: working set is tiny and the default
            # scoped budget leaves headroom on v7x's 64 MiB physical VMEM.
        ),
    )(x_flat, w1p, b1p, w2p, b2p)

    return out_flat.reshape(B, C, H, W)


def _reference(x, w1, b1, w2, b2):
    """Pure NumPy float64 reference: Conv3x3(pad=1)+ReLU twice, plus residual."""
    def conv_relu(inp, w, b):
        Bn, Cn, Hn, Wn = inp.shape
        O = w.shape[0]
        xp = np.zeros((Bn, Cn, Hn + 2, Wn + 2), dtype=np.float64)
        xp[:, :, 1:Hn + 1, 1:Wn + 1] = inp
        out = np.zeros((Bn, O, Hn, Wn), dtype=np.float64)
        for kh in range(3):
            for kw in range(3):
                tap = xp[:, :, kh:kh + Hn, kw:kw + Wn]
                out += np.einsum("oi,bihw->bohw", w[:, :, kh, kw], tap)
        out += b.reshape(1, O, 1, 1)
        return np.maximum(out, 0.0)

    x64 = np.asarray(x, dtype=np.float64)
    w1_, b1_, w2_, b2_ = (np.asarray(a, dtype=np.float64) for a in (w1, b1, w2, b2))
    h = conv_relu(x64, w1_, b1_)
    h = conv_relu(h, w2_, b2_)
    return h + x64


if __name__ == "__main__":
    key = jax.random.PRNGKey(0)
    k_x, k_w1, k_b1, k_w2, k_b2 = jax.random.split(key, 5)

    B, OUTC, H, W = 2, 4, 16, 16

    x = jax.random.normal(k_x, (B, OUTC, H, W), dtype=jnp.float32)
    # Deterministic synthetic parameters (shapes from Conv2d(outc, outc, 3, padding=1)).
    w1 = 0.1 * jax.random.normal(k_w1, (OUTC, OUTC, 3, 3), dtype=jnp.float32)
    b1 = 0.1 * jax.random.normal(k_b1, (OUTC,), dtype=jnp.float32)
    w2 = 0.1 * jax.random.normal(k_w2, (OUTC, OUTC, 3, 3), dtype=jnp.float32)
    b2 = 0.1 * jax.random.normal(k_b2, (OUTC,), dtype=jnp.float32)

    out = jax.block_until_ready(double_residual_conv(x, w1, b1, w2, b2))

    ref = _reference(x, w1, b1, w2, b2)
    assert out.shape == (B, OUTC, H, W), out.shape
    assert np.allclose(np.asarray(out, dtype=np.float64), ref, atol=2e-3, rtol=2e-3)

    print("KERNEL_OK")
</pallas_src>

<mosaic_0001>
module attributes {stable_mosaic.version = 11 : i64} {
  func.func @_double_res_conv_kernel(%arg0: i32, %arg1: memref<2x4x256xf32, #tpu.memory_space<vmem>>, %arg2: memref<9x4x4xf32, #tpu.memory_space<vmem>>, %arg3: memref<4x1xf32, #tpu.memory_space<vmem>>, %arg4: memref<9x4x4xf32, #tpu.memory_space<vmem>>, %arg5: memref<4x1xf32, #tpu.memory_space<vmem>>, %arg6: memref<2x4x256xf32, #tpu.memory_space<vmem>>) attributes {dimension_semantics = [#tpu.dimension_semantics<parallel>], iteration_bounds = array<i64: 1>, scalar_prefetch = 0 : i64, scratch_operands = 0 : i64, tpu.core_type = #tpu.core_type<tc>, window_params = [{transform_indices = @transform_0, window_bounds = array<i64: 2, 4, 256>}, {pipeline_mode = #tpu.pipeline_mode<synchronous>, transform_indices = @transform_1, window_bounds = array<i64: 9, 4, 4>}, {pipeline_mode = #tpu.pipeline_mode<synchronous>, transform_indices = @transform_2, window_bounds = array<i64: 4, 1>}, {pipeline_mode = #tpu.pipeline_mode<synchronous>, transform_indices = @transform_3, window_bounds = array<i64: 9, 4, 4>}, {pipeline_mode = #tpu.pipeline_mode<synchronous>, transform_indices = @transform_4, window_bounds = array<i64: 4, 1>}, {transform_indices = @transform_5, window_bounds = array<i64: 2, 4, 256>}]} {
    %0 = tpu.iota {dimensions = array<i32: 1>} : vector<1x256xi32>
    %1 = tpu.iota {dimensions = array<i32: 1>} : vector<1x16xi32>
    %2 = tpu.concatenate %1, %1, %1, %1, %1, %1, %1, %1, %1, %1, %1, %1, %1, %1, %1, %1 in 1 : vector<1x16xi32>, vector<1x16xi32>, vector<1x16xi32>, vector<1x16xi32>, vector<1x16xi32>, vector<1x16xi32>, vector<1x16xi32>, vector<1x16xi32>, vector<1x16xi32>, vector<1x16xi32>, vector<1x16xi32>, vector<1x16xi32>, vector<1x16xi32>, vector<1x16xi32>, vector<1x16xi32>, vector<1x16xi32> -> vector<1x256xi32>
    %c16_i32 = arith.constant 16 : i32
    %3 = vector.broadcast %c16_i32 : i32 to vector<1x256xi32>
    %4 = arith.cmpi sge, %0, %3 : vector<1x256xi32>
    %c1_i32 = arith.constant 1 : i32
    %5 = vector.broadcast %c1_i32 : i32 to vector<1x256xi32>
    %6 = arith.cmpi sge, %2, %5 : vector<1x256xi32>
    %7 = arith.andi %4, %6 : vector<1x256xi1>
    %c16_i32_0 = arith.constant 16 : i32
    %8 = vector.broadcast %c16_i32_0 : i32 to vector<1x256xi32>
    %9 = arith.cmpi sge, %0, %8 : vector<1x256xi32>
    %c16_i32_1 = arith.constant 16 : i32
    %10 = vector.broadcast %c16_i32_1 : i32 to vector<1x256xi32>
    %11 = arith.cmpi sge, %0, %10 : vector<1x256xi32>
    %c15_i32 = arith.constant 15 : i32
    %12 = vector.broadcast %c15_i32 : i32 to vector<1x256xi32>
    %13 = arith.cmpi slt, %2, %12 : vector<1x256xi32>
    %14 = arith.andi %11, %13 : vector<1x256xi1>
    %c1_i32_2 = arith.constant 1 : i32
    %15 = vector.broadcast %c1_i32_2 : i32 to vector<1x256xi32>
    %16 = arith.cmpi sge, %2, %15 : vector<1x256xi32>
    %c15_i32_3 = arith.constant 15 : i32
    %17 = vector.broadcast %c15_i32_3 : i32 to vector<1x256xi32>
    %18 = arith.cmpi slt, %2, %17 : vector<1x256xi32>
    %c240_i32 = arith.constant 240 : i32
    %19 = vector.broadcast %c240_i32 : i32 to vector<1x256xi32>
    %20 = arith.cmpi slt, %0, %19 : vector<1x256xi32>
    %c1_i32_4 = arith.constant 1 : i32
    %21 = vector.broadcast %c1_i32_4 : i32 to vector<1x256xi32>
    %22 = arith.cmpi sge, %2, %21 : vector<1x256xi32>
    %23 = arith.andi %20, %22 : vector<1x256xi1>
    %c240_i32_5 = arith.constant 240 : i32
    %24 = vector.broadcast %c240_i32_5 : i32 to vector<1x256xi32>
    %25 = arith.cmpi slt, %0, %24 : vector<1x256xi32>
    %c240_i32_6 = arith.constant 240 : i32
    %26 = vector.broadcast %c240_i32_6 : i32 to vector<1x256xi32>
    %27 = arith.cmpi slt, %0, %26 : vector<1x256xi32>
    %c15_i32_7 = arith.constant 15 : i32
    %28 = vector.broadcast %c15_i32_7 : i32 to vector<1x256xi32>
    %29 = arith.cmpi slt, %2, %28 : vector<1x256xi32>
    %30 = arith.andi %27, %29 : vector<1x256xi1>
    %c0 = arith.constant 0 : index
    %c0_8 = arith.constant 0 : index
    %c0_9 = arith.constant 0 : index
    %31 = vector.load %arg1[%c0, %c0_8, %c0_9] : memref<2x4x256xf32, #tpu.memory_space<vmem>>, vector<1x4x256xf32>
    %32 = vector.shape_cast %31 : vector<1x4x256xf32> to vector<4x256xf32>
    %c17_i32 = arith.constant 17 : i32
    %33 = tpu.dynamic_rotate %32 by %c17_i32 dim 1 : vector<4x256xf32>, i32 -> vector<4x256xf32>
    %cst = arith.constant 0.000000e+00 : f32
    %34 = vector.shape_cast %7 : vector<1x256xi1> to vector<1x256xi1>
    %35 = vector.broadcast %34 : vector<1x256xi1> to vector<4x256xi1>
    %36 = vector.broadcast %cst : f32 to vector<4x256xf32>
    %37 = arith.select %35, %33, %36 : vector<4x256xi1>, vector<4x256xf32>
    %c0_10 = arith.constant 0 : index
    %c0_11 = arith.constant 0 : index
    %c0_12 = arith.constant 0 : index
    %38 = vector.load %arg2[%c0_10, %c0_11, %c0_12] : memref<9x4x4xf32, #tpu.memory_space<vmem>>, vector<1x4x4xf32>
    %39 = vector.shape_cast %38 : vector<1x4x4xf32> to vector<4x4xf32>
    %cst_13 = arith.constant dense<0.000000e+00> : vector<4x256xf32>
    %40 = tpu.matmul %39, %37, %cst_13 {dimension_numbers = #tpu.dot_dimension_numbers<[1], [0], [0], [1], [0, 0, 1, 1], [], []>} : vector<4x4xf32>, vector<4x256xf32>, vector<4x256xf32> -> vector<4x256xf32>
    %c16_i32_14 = arith.constant 16 : i32
    %41 = tpu.dynamic_rotate %32 by %c16_i32_14 dim 1 : vector<4x256xf32>, i32 -> vector<4x256xf32>
    %cst_15 = arith.constant 0.000000e+00 : f32
    %42 = vector.shape_cast %9 : vector<1x256xi1> to vector<1x256xi1>
    %43 = vector.broadcast %42 : vector<1x256xi1> to vector<4x256xi1>
    %44 = vector.broadcast %cst_15 : f32 to vector<4x256xf32>
    %45 = arith.select %43, %41, %44 : vector<4x256xi1>, vector<4x256xf32>
    %c1 = arith.constant 1 : index
    %c0_16 = arith.constant 0 : index
    %c0_17 = arith.constant 0 : index
    %46 = vector.load %arg2[%c1, %c0_16, %c0_17] : memref<9x4x4xf32, #tpu.memory_space<vmem>>, vector<1x4x4xf32>
    %47 = vector.shape_cast %46 : vector<1x4x4xf32> to vector<4x4xf32>
    %cst_18 = arith.constant dense<0.000000e+00> : vector<4x256xf32>
    %48 = tpu.matmul %47, %45, %cst_18 {dimension_numbers = #tpu.dot_dimension_numbers<[1], [0], [0], [1], [0, 0, 1, 1], [], []>} : vector<4x4xf32>, vector<4x256xf32>, vector<4x256xf32> -> vector<4x256xf32>
    %49 = arith.addf %40, %48 : vector<4x256xf32>
    %c15_i32_19 = arith.constant 15 : i32
    %50 = tpu.dynamic_rotate %32 by %c15_i32_19 dim 1 : vector<4x256xf32>, i32 -> vector<4x256xf32>
    %cst_20 = arith.constant 0.000000e+00 : f32
    %51 = vector.shape_cast %14 : vector<1x256xi1> to vector<1x256xi1>
    %52 = vector.broadcast %51 : vector<1x256xi1> to vector<4x256xi1>
    %53 = vector.broadcast %cst_20 : f32 to vector<4x256xf32>
    %54 = arith.select %52, %50, %53 : vector<4x256xi1>, vector<4x256xf32>
    %c2 = arith.constant 2 : index
    %c0_21 = arith.constant 0 : index
    %c0_22 = arith.constant 0 : index
    %55 = vector.load %arg2[%c2, %c0_21, %c0_22] : memref<9x4x4xf32, #tpu.memory_space<vmem>>, vector<1x4x4xf32>
    %56 = vector.shape_cast %55 : vector<1x4x4xf32> to vector<4x4xf32>
    %cst_23 = arith.constant dense<0.000000e+00> : vector<4x256xf32>
    %57 = tpu.matmul %56, %54, %cst_23 {dimension_numbers = #tpu.dot_dimension_numbers<[1], [0], [0], [1], [0, 0, 1, 1], [], []>} : vector<4x4xf32>, vector<4x256xf32>, vector<4x256xf32> -> vector<4x256xf32>
    %58 = arith.addf %49, %57 : vector<4x256xf32>
    %c1_i32_24 = arith.constant 1 : i32
    %59 = tpu.dynamic_rotate %32 by %c1_i32_24 dim 1 : vector<4x256xf32>, i32 -> vector<4x256xf32>
    %cst_25 = arith.constant 0.000000e+00 : f32
    %60 = vector.shape_cast %16 : vector<1x256xi1> to vector<1x256xi1>
    %61 = vector.broadcast %60 : vector<1x256xi1> to vector<4x256xi1>
    %62 = vector.broadcast %cst_25 : f32 to vector<4x256xf32>
    %63 = arith.select %61, %59, %62 : vector<4x256xi1>, vector<4x256xf32>
    %c3 = arith.constant 3 : index
    %c0_26 = arith.constant 0 : index
    %c0_27 = arith.constant 0 : index
    %64 = vector.load %arg2[%c3, %c0_26, %c0_27] : memref<9x4x4xf32, #tpu.memory_space<vmem>>, vector<1x4x4xf32>
    %65 = vector.shape_cast %64 : vector<1x4x4xf32> to vector<4x4xf32>
    %cst_28 = arith.constant dense<0.000000e+00> : vector<4x256xf32>
    %66 = tpu.matmul %65, %63, %cst_28 {dimension_numbers = #tpu.dot_dimension_numbers<[1], [0], [0], [1], [0, 0, 1, 1], [], []>} : vector<4x4xf32>, vector<4x256xf32>, vector<4x256xf32> -> vector<4x256xf32>
    %67 = arith.addf %58, %66 : vector<4x256xf32>
    %c4 = arith.constant 4 : index
    %c0_29 = arith.constant 0 : index
    %c0_30 = arith.constant 0 : index
    %68 = vector.load %arg2[%c4, %c0_29, %c0_30] : memref<9x4x4xf32, #tpu.memory_space<vmem>>, vector<1x4x4xf32>
    %69 = vector.shape_cast %68 : vector<1x4x4xf32> to vector<4x4xf32>
    %cst_31 = arith.constant dense<0.000000e+00> : vector<4x256xf32>
    %70 = tpu.matmul %69, %32, %cst_31 {dimension_numbers = #tpu.dot_dimension_numbers<[1], [0], [0], [1], [0, 0, 1, 1], [], []>} : vector<4x4xf32>, vector<4x256xf32>, vector<4x256xf32> -> vector<4x256xf32>
    %71 = arith.addf %67, %70 : vector<4x256xf32>
    %c255_i32 = arith.constant 255 : i32
    %72 = tpu.dynamic_rotate %32 by %c255_i32 dim 1 : vector<4x256xf32>, i32 -> vector<4x256xf32>
    %cst_32 = arith.constant 0.000000e+00 : f32
    %73 = vector.shape_cast %18 : vector<1x256xi1> to vector<1x256xi1>
    %74 = vector.broadcast %73 : vector<1x256xi1> to vector<4x256xi1>
    %75 = vector.broadcast %cst_32 : f32 to vector<4x256xf32>
    %76 = arith.select %74, %72, %75 : vector<4x256xi1>, vector<4x256xf32>
    %c5 = arith.constant 5 : index
    %c0_33 = arith.constant 0 : index
    %c0_34 = arith.constant 0 : index
    %77 = vector.load %arg2[%c5, %c0_33, %c0_34] : memref<9x4x4xf32, #tpu.memory_space<vmem>>, vector<1x4x4xf32>
    %78 = vector.shape_cast %77 : vector<1x4x4xf32> to vector<4x4xf32>
    %cst_35 = arith.constant dense<0.000000e+00> : vector<4x256xf32>
    %79 = tpu.matmul %78, %76, %cst_35 {dimension_numbers = #tpu.dot_dimension_numbers<[1], [0], [0], [1], [0, 0, 1, 1], [], []>} : vector<4x4xf32>, vector<4x256xf32>, vector<4x256xf32> -> vector<4x256xf32>
    %80 = arith.addf %71, %79 : vector<4x256xf32>
    %c241_i32 = arith.constant 241 : i32
    %81 = tpu.dynamic_rotate %32 by %c241_i32 dim 1 : vector<4x256xf32>, i32 -> vector<4x256xf32>
    %cst_36 = arith.constant 0.000000e+00 : f32
    %82 = vector.shape_cast %23 : vector<1x256xi1> to vector<1x256xi1>
    %83 = vector.broadcast %82 : vector<1x256xi1> to vector<4x256xi1>
    %84 = vector.broadcast %cst_36 : f32 to vector<4x256xf32>
    %85 = arith.select %83, %81, %84 : vector<4x256xi1>, vector<4x256xf32>
    %c6 = arith.constant 6 : index
    %c0_37 = arith.constant 0 : index
    %c0_38 = arith.constant 0 : index
    %86 = vector.load %arg2[%c6, %c0_37, %c0_38] : memref<9x4x4xf32, #tpu.memory_space<vmem>>, vector<1x4x4xf32>
    %87 = vector.shape_cast %86 : vector<1x4x4xf32> to vector<4x4xf32>
    %cst_39 = arith.constant dense<0.000000e+00> : vector<4x256xf32>
    %88 = tpu.matmul %87, %85, %cst_39 {dimension_numbers = #tpu.dot_dimension_numbers<[1], [0], [0], [1], [0, 0, 1, 1], [], []>} : vector<4x4xf32>, vector<4x256xf32>, vector<4x256xf32> -> vector<4x256xf32>
    %89 = arith.addf %80, %88 : vector<4x256xf32>
    %c240_i32_40 = arith.constant 240 : i32
    %90 = tpu.dynamic_rotate %32 by %c240_i32_40 dim 1 : vector<4x256xf32>, i32 -> vector<4x256xf32>
    %cst_41 = arith.constant 0.000000e+00 : f32
    %91 = vector.shape_cast %25 : vector<1x256xi1> to vector<1x256xi1>
    %92 = vector.broadcast %91 : vector<1x256xi1> to vector<4x256xi1>
    %93 = vector.broadcast %cst_41 : f32 to vector<4x256xf32>
    %94 = arith.select %92, %90, %93 : vector<4x256xi1>, vector<4x256xf32>
    %c7 = arith.constant 7 : index
    %c0_42 = arith.constant 0 : index
    %c0_43 = arith.constant 0 : index
    %95 = vector.load %arg2[%c7, %c0_42, %c0_43] : memref<9x4x4xf32, #tpu.memory_space<vmem>>, vector<1x4x4xf32>
    %96 = vector.shape_cast %95 : vector<1x4x4xf32> to vector<4x4xf32>
    %cst_44 = arith.constant dense<0.000000e+00> : vector<4x256xf32>
    %97 = tpu.matmul %96, %94, %cst_44 {dimension_numbers = #tpu.dot_dimension_numbers<[1], [0], [0], [1], [0, 0, 1, 1], [], []>} : vector<4x4xf32>, vector<4x256xf32>, vector<4x256xf32> -> vector<4x256xf32>
    %98 = arith.addf %89, %97 : vector<4x256xf32>
    %c239_i32 = arith.constant 239 : i32
    %99 = tpu.dynamic_rotate %32 by %c239_i32 dim 1 : vector<4x256xf32>, i32 -> vector<4x256xf32>
    %cst_45 = arith.constant 0.000000e+00 : f32
    %100 = vector.shape_cast %30 : vector<1x256xi1> to vector<1x256xi1>
    %101 = vector.broadcast %100 : vector<1x256xi1> to vector<4x256xi1>
    %102 = vector.broadcast %cst_45 : f32 to vector<4x256xf32>
    %103 = arith.select %101, %99, %102 : vector<4x256xi1>, vector<4x256xf32>
    %c8 = arith.constant 8 : index
    %c0_46 = arith.constant 0 : index
    %c0_47 = arith.constant 0 : index
    %104 = vector.load %arg2[%c8, %c0_46, %c0_47] : memref<9x4x4xf32, #tpu.memory_space<vmem>>, vector<1x4x4xf32>
    %105 = vector.shape_cast %104 : vector<1x4x4xf32> to vector<4x4xf32>
    %cst_48 = arith.constant dense<0.000000e+00> : vector<4x256xf32>
    %106 = tpu.matmul %105, %103, %cst_48 {dimension_numbers = #tpu.dot_dimension_numbers<[1], [0], [0], [1], [0, 0, 1, 1], [], []>} : vector<4x4xf32>, vector<4x256xf32>, vector<4x256xf32> -> vector<4x256xf32>
    %107 = arith.addf %98, %106 : vector<4x256xf32>
    %c0_49 = arith.constant 0 : index
    %c0_50 = arith.constant 0 : index
    %108 = vector.load %arg3[%c0_49, %c0_50] : memref<4x1xf32, #tpu.memory_space<vmem>>, vector<4x1xf32>
    %109 = vector.broadcast %108 : vector<4x1xf32> to vector<4x256xf32>
    %110 = arith.addf %107, %109 : vector<4x256xf32>
    %cst_51 = arith.constant 0.000000e+00 : f32
    %111 = vector.broadcast %cst_51 : f32 to vector<4x256xf32>
    %112 = arith.maximumf %110, %111 : vector<4x256xf32>
    %c17_i32_52 = arith.constant 17 : i32
    %113 = tpu.dynamic_rotate %112 by %c17_i32_52 dim 1 : vector<4x256xf32>, i32 -> vector<4x256xf32>
    %cst_53 = arith.constant 0.000000e+00 : f32
    %114 = vector.shape_cast %7 : vector<1x256xi1> to vector<1x256xi1>
    %115 = vector.broadcast %114 : vector<1x256xi1> to vector<4x256xi1>
    %116 = vector.broadcast %cst_53 : f32 to vector<4x256xf32>
    %117 = arith.select %115, %113, %116 : vector<4x256xi1>, vector<4x256xf32>
    %c0_54 = arith.constant 0 : index
    %c0_55 = arith.constant 0 : index
    %c0_56 = arith.constant 0 : index
    %118 = vector.load %arg4[%c0_54, %c0_55, %c0_56] : memref<9x4x4xf32, #tpu.memory_space<vmem>>, vector<1x4x4xf32>
    %119 = vector.shape_cast %118 : vector<1x4x4xf32> to vector<4x4xf32>
    %cst_57 = arith.constant dense<0.000000e+00> : vector<4x256xf32>
    %120 = tpu.matmul %119, %117, %cst_57 {dimension_numbers = #tpu.dot_dimension_numbers<[1], [0], [0], [1], [0, 0, 1, 1], [], []>} : vector<4x4xf32>, vector<4x256xf32>, vector<4x256xf32> -> vector<4x256xf32>
    %c16_i32_58 = arith.constant 16 : i32
    %121 = tpu.dynamic_rotate %112 by %c16_i32_58 dim 1 : vector<4x256xf32>, i32 -> vector<4x256xf32>
    %cst_59 = arith.constant 0.000000e+00 : f32
    %122 = vector.shape_cast %9 : vector<1x256xi1> to vector<1x256xi1>
    %123 = vector.broadcast %122 : vector<1x256xi1> to vector<4x256xi1>
    %124 = vector.broadcast %cst_59 : f32 to vector<4x256xf32>
    %125 = arith.select %123, %121, %124 : vector<4x256xi1>, vector<4x256xf32>
    %c1_60 = arith.constant 1 : index
    %c0_61 = arith.constant 0 : index
    %c0_62 = arith.constant 0 : index
    %126 = vector.load %arg4[%c1_60, %c0_61, %c0_62] : memref<9x4x4xf32, #tpu.memory_space<vmem>>, vector<1x4x4xf32>
    %127 = vector.shape_cast %126 : vector<1x4x4xf32> to vector<4x4xf32>
    %cst_63 = arith.constant dense<0.000000e+00> : vector<4x256xf32>
    %128 = tpu.matmul %127, %125, %cst_63 {dimension_numbers = #tpu.dot_dimension_numbers<[1], [0], [0], [1], [0, 0, 1, 1], [], []>} : vector<4x4xf32>, vector<4x256xf32>, vector<4x256xf32> -> vector<4x256xf32>
    %129 = arith.addf %120, %128 : vector<4x256xf32>
    %c15_i32_64 = arith.constant 15 : i32
    %130 = tpu.dynamic_rotate %112 by %c15_i32_64 dim 1 : vector<4x256xf32>, i32 -> vector<4x256xf32>
    %cst_65 = arith.constant 0.000000e+00 : f32
    %131 = vector.shape_cast %14 : vector<1x256xi1> to vector<1x256xi1>
    %132 = vector.broadcast %131 : vector<1x256xi1> to vector<4x256xi1>
    %133 = vector.broadcast %cst_65 : f32 to vector<4x256xf32>
    %134 = arith.select %132, %130, %133 : vector<4x256xi1>, vector<4x256xf32>
    %c2_66 = arith.constant 2 : index
    %c0_67 = arith.constant 0 : index
    %c0_68 = arith.constant 0 : index
    %135 = vector.load %arg4[%c2_66, %c0_67, %c0_68] : memref<9x4x4xf32, #tpu.memory_space<vmem>>, vector<1x4x4xf32>
    %136 = vector.shape_cast %135 : vector<1x4x4xf32> to vector<4x4xf32>
    %cst_69 = arith.constant dense<0.000000e+00> : vector<4x256xf32>
    %137 = tpu.matmul %136, %134, %cst_69 {dimension_numbers = #tpu.dot_dimension_numbers<[1], [0], [0], [1], [0, 0, 1, 1], [], []>} : vector<4x4xf32>, vector<4x256xf32>, vector<4x256xf32> -> vector<4x256xf32>
    %138 = arith.addf %129, %137 : vector<4x256xf32>
    %c1_i32_70 = arith.constant 1 : i32
    %139 = tpu.dynamic_rotate %112 by %c1_i32_70 dim 1 : vector<4x256xf32>, i32 -> vector<4x256xf32>
    %cst_71 = arith.constant 0.000000e+00 : f32
    %140 = vector.shape_cast %16 : vector<1x256xi1> to vector<1x256xi1>
    %141 = vector.broadcast %140 : vector<1x256xi1> to vector<4x256xi1>
    %142 = vector.broadcast %cst_71 : f32 to vector<4x256xf32>
    %143 = arith.select %141, %139, %142 : vector<4x256xi1>, vector<4x256xf32>
    %c3_72 = arith.constant 3 : index
    %c0_73 = arith.constant 0 : index
    %c0_74 = arith.constant 0 : index
    %144 = vector.load %arg4[%c3_72, %c0_73, %c0_74] : memref<9x4x4xf32, #tpu.memory_space<vmem>>, vector<1x4x4xf32>
    %145 = vector.shape_cast %144 : vector<1x4x4xf32> to vector<4x4xf32>
    %cst_75 = arith.constant dense<0.000000e+00> : vector<4x256xf32>
    %146 = tpu.matmul %145, %143, %cst_75 {dimension_numbers = #tpu.dot_dimension_numbers<[1], [0], [0], [1], [0, 0, 1, 1], [], []>} : vector<4x4xf32>, vector<4x256xf32>, vector<4x256xf32> -> vector<4x256xf32>
    %147 = arith.addf %138, %146 : vector<4x256xf32>
    %c4_76 = arith.constant 4 : index
    %c0_77 = arith.constant 0 : index
    %c0_78 = arith.constant 0 : index
    %148 = vector.load %arg4[%c4_76, %c0_77, %c0_78] : memref<9x4x4xf32, #tpu.memory_space<vmem>>, vector<1x4x4xf32>
    %149 = vector.shape_cast %148 : vector<1x4x4xf32> to vector<4x4xf32>
    %cst_79 = arith.constant dense<0.000000e+00> : vector<4x256xf32>
    %150 = tpu.matmul %149, %112, %cst_79 {dimension_numbers = #tpu.dot_dimension_numbers<[1], [0], [0], [1], [0, 0, 1, 1], [], []>} : vector<4x4xf32>, vector<4x256xf32>, vector<4x256xf32> -> vector<4x256xf32>
    %151 = arith.addf %147, %150 : vector<4x256xf32>
    %c255_i32_80 = arith.constant 255 : i32
    %152 = tpu.dynamic_rotate %112 by %c255_i32_80 dim 1 : vector<4x256xf32>, i32 -> vector<4x256xf32>
    %cst_81 = arith.constant 0.000000e+00 : f32
    %153 = vector.shape_cast %18 : vector<1x256xi1> to vector<1x256xi1>
    %154 = vector.broadcast %153 : vector<1x256xi1> to vector<4x256xi1>
    %155 = vector.broadcast %cst_81 : f32 to vector<4x256xf32>
    %156 = arith.select %154, %152, %155 : vector<4x256xi1>, vector<4x256xf32>
    %c5_82 = arith.constant 5 : index
    %c0_83 = arith.constant 0 : index
    %c0_84 = arith.constant 0 : index
    %157 = vector.load %arg4[%c5_82, %c0_83, %c0_84] : memref<9x4x4xf32, #tpu.memory_space<vmem>>, vector<1x4x4xf32>
    %158 = vector.shape_cast %157 : vector<1x4x4xf32> to vector<4x4xf32>
    %cst_85 = arith.constant dense<0.000000e+00> : vector<4x256xf32>
    %159 = tpu.matmul %158, %156, %cst_85 {dimension_numbers = #tpu.dot_dimension_numbers<[1], [0], [0], [1], [0, 0, 1, 1], [], []>} : vector<4x4xf32>, vector<4x256xf32>, vector<4x256xf32> -> vector<4x256xf32>
    %160 = arith.addf %151, %159 : vector<4x256xf32>
    %c241_i32_86 = arith.constant 241 : i32
    %161 = tpu.dynamic_rotate %112 by %c241_i32_86 dim 1 : vector<4x256xf32>, i32 -> vector<4x256xf32>
    %cst_87 = arith.constant 0.000000e+00 : f32
    %162 = vector.shape_cast %23 : vector<1x256xi1> to vector<1x256xi1>
    %163 = vector.broadcast %162 : vector<1x256xi1> to vector<4x256xi1>
    %164 = vector.broadcast %cst_87 : f32 to vector<4x256xf32>
    %165 = arith.select %163, %161, %164 : vector<4x256xi1>, vector<4x256xf32>
    %c6_88 = arith.constant 6 : index
    %c0_89 = arith.constant 0 : index
    %c0_90 = arith.constant 0 : index
    %166 = vector.load %arg4[%c6_88, %c0_89, %c0_90] : memref<9x4x4xf32, #tpu.memory_space<vmem>>, vector<1x4x4xf32>
    %167 = vector.shape_cast %166 : vector<1x4x4xf32> to vector<4x4xf32>
    %cst_91 = arith.constant dense<0.000000e+00> : vector<4x256xf32>
    %168 = tpu.matmul %167, %165, %cst_91 {dimension_numbers = #tpu.dot_dimension_numbers<[1], [0], [0], [1], [0, 0, 1, 1], [], []>} : vector<4x4xf32>, vector<4x256xf32>, vector<4x256xf32> -> vector<4x256xf32>
    %169 = arith.addf %160, %168 : vector<4x256xf32>
    %c240_i32_92 = arith.constant 240 : i32
    %170 = tpu.dynamic_rotate %112 by %c240_i32_92 dim 1 : vector<4x256xf32>, i32 -> vector<4x256xf32>
    %cst_93 = arith.constant 0.000000e+00 : f32
    %171 = vector.shape_cast %25 : vector<1x256xi1> to vector<1x256xi1>
    %172 = vector.broadcast %171 : vector<1x256xi1> to vector<4x256xi1>
    %173 = vector.broadcast %cst_93 : f32 to vector<4x256xf32>
    %174 = arith.select %172, %170, %173 : vector<4x256xi1>, vector<4x256xf32>
    %c7_94 = arith.constant 7 : index
    %c0_95 = arith.constant 0 : index
    %c0_96 = arith.constant 0 : index
    %175 = vector.load %arg4[%c7_94, %c0_95, %c0_96] : memref<9x4x4xf32, #tpu.memory_space<vmem>>, vector<1x4x4xf32>
    %176 = vector.shape_cast %175 : vector<1x4x4xf32> to vector<4x4xf32>
    %cst_97 = arith.constant dense<0.000000e+00> : vector<4x256xf32>
    %177 = tpu.matmul %176, %174, %cst_97 {dimension_numbers = #tpu.dot_dimension_numbers<[1], [0], [0], [1], [0, 0, 1, 1], [], []>} : vector<4x4xf32>, vector<4x256xf32>, vector<4x256xf32> -> vector<4x256xf32>
    %178 = arith.addf %169, %177 : vector<4x256xf32>
    %c239_i32_98 = arith.constant 239 : i32
    %179 = tpu.dynamic_rotate %112 by %c239_i32_98 dim 1 : vector<4x256xf32>, i32 -> vector<4x256xf32>
    %cst_99 = arith.constant 0.000000e+00 : f32
    %180 = vector.shape_cast %30 : vector<1x256xi1> to vector<1x256xi1>
    %181 = vector.broadcast %180 : vector<1x256xi1> to vector<4x256xi1>
    %182 = vector.broadcast %cst_99 : f32 to vector<4x256xf32>
    %183 = arith.select %181, %179, %182 : vector<4x256xi1>, vector<4x256xf32>
    %c8_100 = arith.constant 8 : index
    %c0_101 = arith.constant 0 : index
    %c0_102 = arith.constant 0 : index
    %184 = vector.load %arg4[%c8_100, %c0_101, %c0_102] : memref<9x4x4xf32, #tpu.memory_space<vmem>>, vector<1x4x4xf32>
    %185 = vector.shape_cast %184 : vector<1x4x4xf32> to vector<4x4xf32>
    %cst_103 = arith.constant dense<0.000000e+00> : vector<4x256xf32>
    %186 = tpu.matmul %185, %183, %cst_103 {dimension_numbers = #tpu.dot_dimension_numbers<[1], [0], [0], [1], [0, 0, 1, 1], [], []>} : vector<4x4xf32>, vector<4x256xf32>, vector<4x256xf32> -> vector<4x256xf32>
    %187 = arith.addf %178, %186 : vector<4x256xf32>
    %c0_104 = arith.constant 0 : index
    %c0_105 = arith.constant 0 : index
    %188 = vector.load %arg5[%c0_104, %c0_105] : memref<4x1xf32, #tpu.memory_space<vmem>>, vector<4x1xf32>
    %189 = vector.broadcast %188 : vector<4x1xf32> to vector<4x256xf32>
    %190 = arith.addf %187, %189 : vector<4x256xf32>
    %cst_106 = arith.constant 0.000000e+00 : f32
    %191 = vector.broadcast %cst_106 : f32 to vector<4x256xf32>
    %192 = arith.maximumf %190, %191 : vector<4x256xf32>
    %193 = arith.addf %192, %32 : vector<4x256xf32>
    %c0_107 = arith.constant 0 : index
    %c0_108 = arith.constant 0 : index
    %c0_109 = arith.constant 0 : index
    %194 = vector.load %arg6[%c0_107, %c0_108, %c0_109] : memref<2x4x256xf32, #tpu.memory_space<vmem>>, vector<1x4x256xf32>
    %195 = vector.shape_cast %194 : vector<1x4x256xf32> to vector<4x256xf32>
    %196 = vector.shape_cast %193 : vector<4x256xf32> to vector<1x4x256xf32>
    tpu.vector_store %arg6[%c0_107, %c0_108, %c0_109], %196 {strides = array<i32>} : memref<2x4x256xf32, #tpu.memory_space<vmem>>, vector<1x4x256xf32>,
    %c1_110 = arith.constant 1 : index
    %c0_111 = arith.constant 0 : index
    %c0_112 = arith.constant 0 : index
    %197 = vector.load %arg1[%c1_110, %c0_111, %c0_112] : memref<2x4x256xf32, #tpu.memory_space<vmem>>, vector<1x4x256xf32>
    %198 = vector.shape_cast %197 : vector<1x4x256xf32> to vector<4x256xf32>
    %c17_i32_113 = arith.constant 17 : i32
    %199 = tpu.dynamic_rotate %198 by %c17_i32_113 dim 1 : vector<4x256xf32>, i32 -> vector<4x256xf32>
    %cst_114 = arith.constant 0.000000e+00 : f32
    %200 = vector.shape_cast %7 : vector<1x256xi1> to vector<1x256xi1>
    %201 = vector.broadcast %200 : vector<1x256xi1> to vector<4x256xi1>
    %202 = vector.broadcast %cst_114 : f32 to vector<4x256xf32>
    %203 = arith.select %201, %199, %202 : vector<4x256xi1>, vector<4x256xf32>
    %c0_115 = arith.constant 0 : index
    %c0_116 = arith.constant 0 : index
    %c0_117 = arith.constant 0 : index
    %204 = vector.load %arg2[%c0_115, %c0_116, %c0_117] : memref<9x4x4xf32, #tpu.memory_space<vmem>>, vector<1x4x4xf32>
    %205 = vector.shape_cast %204 : vector<1x4x4xf32> to vector<4x4xf32>
    %cst_118 = arith.constant dense<0.000000e+00> : vector<4x256xf32>
    %206 = tpu.matmul %205, %203, %cst_118 {dimension_numbers = #tpu.dot_dimension_numbers<[1], [0], [0], [1], [0, 0, 1, 1], [], []>} : vector<4x4xf32>, vector<4x256xf32>, vector<4x256xf32> -> vector<4x256xf32>
    %c16_i32_119 = arith.constant 16 : i32
    %207 = tpu.dynamic_rotate %198 by %c16_i32_119 dim 1 : vector<4x256xf32>, i32 -> vector<4x256xf32>
    %cst_120 = arith.constant 0.000000e+00 : f32
    %208 = vector.shape_cast %9 : vector<1x256xi1> to vector<1x256xi1>
    %209 = vector.broadcast %208 : vector<1x256xi1> to vector<4x256xi1>
    %210 = vector.broadcast %cst_120 : f32 to vector<4x256xf32>
    %211 = arith.select %209, %207, %210 : vector<4x256xi1>, vector<4x256xf32>
    %c1_121 = arith.constant 1 : index
    %c0_122 = arith.constant 0 : index
    %c0_123 = arith.constant 0 : index
    %212 = vector.load %arg2[%c1_121, %c0_122, %c0_123] : memref<9x4x4xf32, #tpu.memory_space<vmem>>, vector<1x4x4xf32>
    %213 = vector.shape_cast %212 : vector<1x4x4xf32> to vector<4x4xf32>
    %cst_124 = arith.constant dense<0.000000e+00> : vector<4x256xf32>
    %214 = tpu.matmul %213, %211, %cst_124 {dimension_numbers = #tpu.dot_dimension_numbers<[1], [0], [0], [1], [0, 0, 1, 1], [], []>} : vector<4x4xf32>, vector<4x256xf32>, vector<4x256xf32> -> vector<4x256xf32>
    %215 = arith.addf %206, %214 : vector<4x256xf32>
    %c15_i32_125 = arith.constant 15 : i32
    %216 = tpu.dynamic_rotate %198 by %c15_i32_125 dim 1 : vector<4x256xf32>, i32 -> vector<4x256xf32>
    %cst_126 = arith.constant 0.000000e+00 : f32
    %217 = vector.shape_cast %14 : vector<1x256xi1> to vector<1x256xi1>
    %218 = vector.broadcast %217 : vector<1x256xi1> to vector<4x256xi1>
    %219 = vector.broadcast %cst_126 : f32 to vector<4x256xf32>
    %220 = arith.select %218, %216, %219 : vector<4x256xi1>, vector<4x256xf32>
    %c2_127 = arith.constant 2 : index
    %c0_128 = arith.constant 0 : index
    %c0_129 = arith.constant 0 : index
    %221 = vector.load %arg2[%c2_127, %c0_128, %c0_129] : memref<9x4x4xf32, #tpu.memory_space<vmem>>, vector<1x4x4xf32>
    %222 = vector.shape_cast %221 : vector<1x4x4xf32> to vector<4x4xf32>
    %cst_130 = arith.constant dense<0.000000e+00> : vector<4x256xf32>
    %223 = tpu.matmul %222, %220, %cst_130 {dimension_numbers = #tpu.dot_dimension_numbers<[1], [0], [0], [1], [0, 0, 1, 1], [], []>} : vector<4x4xf32>, vector<4x256xf32>, vector<4x256xf32> -> vector<4x256xf32>
    %224 = arith.addf %215, %223 : vector<4x256xf32>
    %c1_i32_131 = arith.constant 1 : i32
    %225 = tpu.dynamic_rotate %198 by %c1_i32_131 dim 1 : vector<4x256xf32>, i32 -> vector<4x256xf32>
    %cst_132 = arith.constant 0.000000e+00 : f32
    %226 = vector.shape_cast %16 : vector<1x256xi1> to vector<1x256xi1>
    %227 = vector.broadcast %226 : vector<1x256xi1> to vector<4x256xi1>
    %228 = vector.broadcast %cst_132 : f32 to vector<4x256xf32>
    %229 = arith.select %227, %225, %228 : vector<4x256xi1>, vector<4x256xf32>
    %c3_133 = arith.constant 3 : index
    %c0_134 = arith.constant 0 : index
    %c0_135 = arith.constant 0 : index
    %230 = vector.load %arg2[%c3_133, %c0_134, %c0_135] : memref<9x4x4xf32, #tpu.memory_space<vmem>>, vector<1x4x4xf32>
    %231 = vector.shape_cast %230 : vector<1x4x4xf32> to vector<4x4xf32>
    %cst_136 = arith.constant dense<0.000000e+00> : vector<4x256xf32>
    %232 = tpu.matmul %231, %229, %cst_136 {dimension_numbers = #tpu.dot_dimension_numbers<[1], [0], [0], [1], [0, 0, 1, 1], [], []>} : vector<4x4xf32>, vector<4x256xf32>, vector<4x256xf32> -> vector<4x256xf32>
    %233 = arith.addf %224, %232 : vector<4x256xf32>
    %c4_137 = arith.constant 4 : index
    %c0_138 = arith.constant 0 : index
    %c0_139 = arith.constant 0 : index
    %234 = vector.load %arg2[%c4_137, %c0_138, %c0_139] : memref<9x4x4xf32, #tpu.memory_space<vmem>>, vector<1x4x4xf32>
    %235 = vector.shape_cast %234 : vector<1x4x4xf32> to vector<4x4xf32>
    %cst_140 = arith.constant dense<0.000000e+00> : vector<4x256xf32>
    %236 = tpu.matmul %235, %198, %cst_140 {dimension_numbers = #tpu.dot_dimension_numbers<[1], [0], [0], [1], [0, 0, 1, 1], [], []>} : vector<4x4xf32>, vector<4x256xf32>, vector<4x256xf32> -> vector<4x256xf32>
    %237 = arith.addf %233, %236 : vector<4x256xf32>
    %c255_i32_141 = arith.constant 255 : i32
    %238 = tpu.dynamic_rotate %198 by %c255_i32_141 dim 1 : vector<4x256xf32>, i32 -> vector<4x256xf32>
    %cst_142 = arith.constant 0.000000e+00 : f32
    %239 = vector.shape_cast %18 : vector<1x256xi1> to vector<1x256xi1>
    %240 = vector.broadcast %239 : vector<1x256xi1> to vector<4x256xi1>
    %241 = vector.broadcast %cst_142 : f32 to vector<4x256xf32>
    %242 = arith.select %240, %238, %241 : vector<4x256xi1>, vector<4x256xf32>
    %c5_143 = arith.constant 5 : index
    %c0_144 = arith.constant 0 : index
    %c0_145 = arith.constant 0 : index
    %243 = vector.load %arg2[%c5_143, %c0_144, %c0_145] : memref<9x4x4xf32, #tpu.memory_space<vmem>>, vector<1x4x4xf32>
    %244 = vector.shape_cast %243 : vector<1x4x4xf32> to vector<4x4xf32>
    %cst_146 = arith.constant dense<0.000000e+00> : vector<4x256xf32>
    %245 = tpu.matmul %244, %242, %cst_146 {dimension_numbers = #tpu.dot_dimension_numbers<[1], [0], [0], [1], [0, 0, 1, 1], [], []>} : vector<4x4xf32>, vector<4x256xf32>, vector<4x256xf32> -> vector<4x256xf32>
    %246 = arith.addf %237, %245 : vector<4x256xf32>
    %c241_i32_147 = arith.constant 241 : i32
    %247 = tpu.dynamic_rotate %198 by %c241_i32_147 dim 1 : vector<4x256xf32>, i32 -> vector<4x256xf32>
    %cst_148 = arith.constant 0.000000e+00 : f32
    %248 = vector.shape_cast %23 : vector<1x256xi1> to vector<1x256xi1>
    %249 = vector.broadcast %248 : vector<1x256xi1> to vector<4x256xi1>
    %250 = vector.broadcast %cst_148 : f32 to vector<4x256xf32>
    %251 = arith.select %249, %247, %250 : vector<4x256xi1>, vector<4x256xf32>
    %c6_149 = arith.constant 6 : index
    %c0_150 = arith.constant 0 : index
    %c0_151 = arith.constant 0 : index
    %252 = vector.load %arg2[%c6_149, %c0_150, %c0_151] : memref<9x4x4xf32, #tpu.memory_space<vmem>>, vector<1x4x4xf32>
    %253 = vector.shape_cast %252 : vector<1x4x4xf32> to vector<4x4xf32>
    %cst_152 = arith.constant dense<0.000000e+00> : vector<4x256xf32>
    %254 = tpu.matmul %253, %251, %cst_152 {dimension_numbers = #tpu.dot_dimension_numbers<[1], [0], [0], [1], [0, 0, 1, 1], [], []>} : vector<4x4xf32>, vector<4x256xf32>, vector<4x256xf32> -> vector<4x256xf32>
    %255 = arith.addf %246, %254 : vector<4x256xf32>
    %c240_i32_153 = arith.constant 240 : i32
    %256 = tpu.dynamic_rotate %198 by %c240_i32_153 dim 1 : vector<4x256xf32>, i32 -> vector<4x256xf32>
    %cst_154 = arith.constant 0.000000e+00 : f32
    %257 = vector.shape_cast %25 : vector<1x256xi1> to vector<1x256xi1>
    %258 = vector.broadcast %257 : vector<1x256xi1> to vector<4x256xi1>
    %259 = vector.broadcast %cst_154 : f32 to vector<4x256xf32>
    %260 = arith.select %258, %256, %259 : vector<4x256xi1>, vector<4x256xf32>
    %c7_155 = arith.constant 7 : index
    %c0_156 = arith.constant 0 : index
    %c0_157 = arith.constant 0 : index
    %261 = vector.load %arg2[%c7_155, %c0_156, %c0_157] : memref<9x4x4xf32, #tpu.memory_space<vmem>>, vector<1x4x4xf32>
    %262 = vector.shape_cast %261 : vector<1x4x4xf32> to vector<4x4xf32>
    %cst_158 = arith.constant dense<0.000000e+00> : vector<4x256xf32>
    %263 = tpu.matmul %262, %260, %cst_158 {dimension_numbers = #tpu.dot_dimension_numbers<[1], [0], [0], [1], [0, 0, 1, 1], [], []>} : vector<4x4xf32>, vector<4x256xf32>, vector<4x256xf32> -> vector<4x256xf32>
    %264 = arith.addf %255, %263 : vector<4x256xf32>
    %c239_i32_159 = arith.constant 239 : i32
    %265 = tpu.dynamic_rotate %198 by %c239_i32_159 dim 1 : vector<4x256xf32>, i32 -> vector<4x256xf32>
    %cst_160 = arith.constant 0.000000e+00 : f32
    %266 = vector.shape_cast %30 : vector<1x256xi1> to vector<1x256xi1>
    %267 = vector.broadcast %266 : vector<1x256xi1> to vector<4x256xi1>
    %268 = vector.broadcast %cst_160 : f32 to vector<4x256xf32>
    %269 = arith.select %267, %265, %268 : vector<4x256xi1>, vector<4x256xf32>
    %c8_161 = arith.constant 8 : index
    %c0_162 = arith.constant 0 : index
    %c0_163 = arith.constant 0 : index
    %270 = vector.load %arg2[%c8_161, %c0_162, %c0_163] : memref<9x4x4xf32, #tpu.memory_space<vmem>>, vector<1x4x4xf32>
    %271 = vector.shape_cast %270 : vector<1x4x4xf32> to vector<4x4xf32>
    %cst_164 = arith.constant dense<0.000000e+00> : vector<4x256xf32>
    %272 = tpu.matmul %271, %269, %cst_164 {dimension_numbers = #tpu.dot_dimension_numbers<[1], [0], [0], [1], [0, 0, 1, 1], [], []>} : vector<4x4xf32>, vector<4x256xf32>, vector<4x256xf32> -> vector<4x256xf32>
    %273 = arith.addf %264, %272 : vector<4x256xf32>
    %c0_165 = arith.constant 0 : index
    %c0_166 = arith.constant 0 : index
    %274 = vector.load %arg3[%c0_165, %c0_166] : memref<4x1xf32, #tpu.memory_space<vmem>>, vector<4x1xf32>
    %275 = vector.broadcast %274 : vector<4x1xf32> to vector<4x256xf32>
    %276 = arith.addf %273, %275 : vector<4x256xf32>
    %cst_167 = arith.constant 0.000000e+00 : f32
    %277 = vector.broadcast %cst_167 : f32 to vector<4x256xf32>
    %278 = arith.maximumf %276, %277 : vector<4x256xf32>
    %c17_i32_168 = arith.constant 17 : i32
    %279 = tpu.dynamic_rotate %278 by %c17_i32_168 dim 1 : vector<4x256xf32>, i32 -> vector<4x256xf32>
    %cst_169 = arith.constant 0.000000e+00 : f32
    %280 = vector.shape_cast %7 : vector<1x256xi1> to vector<1x256xi1>
    %281 = vector.broadcast %280 : vector<1x256xi1> to vector<4x256xi1>
    %282 = vector.broadcast %cst_169 : f32 to vector<4x256xf32>
    %283 = arith.select %281, %279, %282 : vector<4x256xi1>, vector<4x256xf32>
    %c0_170 = arith.constant 0 : index
    %c0_171 = arith.constant 0 : index
    %c0_172 = arith.constant 0 : index
    %284 = vector.load %arg4[%c0_170, %c0_171, %c0_172] : memref<9x4x4xf32, #tpu.memory_space<vmem>>, vector<1x4x4xf32>
    %285 = vector.shape_cast %284 : vector<1x4x4xf32> to vector<4x4xf32>
    %cst_173 = arith.constant dense<0.000000e+00> : vector<4x256xf32>
    %286 = tpu.matmul %285, %283, %cst_173 {dimension_numbers = #tpu.dot_dimension_numbers<[1], [0], [0], [1], [0, 0, 1, 1], [], []>} : vector<4x4xf32>, vector<4x256xf32>, vector<4x256xf32> -> vector<4x256xf32>
    %c16_i32_174 = arith.constant 16 : i32
    %287 = tpu.dynamic_rotate %278 by %c16_i32_174 dim 1 : vector<4x256xf32>, i32 -> vector<4x256xf32>
    %cst_175 = arith.constant 0.000000e+00 : f32
    %288 = vector.shape_cast %9 : vector<1x256xi1> to vector<1x256xi1>
    %289 = vector.broadcast %288 : vector<1x256xi1> to vector<4x256xi1>
    %290 = vector.broadcast %cst_175 : f32 to vector<4x256xf32>
    %291 = arith.select %289, %287, %290 : vector<4x256xi1>, vector<4x256xf32>
    %c1_176 = arith.constant 1 : index
    %c0_177 = arith.constant 0 : index
    %c0_178 = arith.constant 0 : index
    %292 = vector.load %arg4[%c1_176, %c0_177, %c0_178] : memref<9x4x4xf32, #tpu.memory_space<vmem>>, vector<1x4x4xf32>
    %293 = vector.shape_cast %292 : vector<1x4x4xf32> to vector<4x4xf32>
    %cst_179 = arith.constant dense<0.000000e+00> : vector<4x256xf32>
    %294 = tpu.matmul %293, %291, %cst_179 {dimension_numbers = #tpu.dot_dimension_numbers<[1], [0], [0], [1], [0, 0, 1, 1], [], []>} : vector<4x4xf32>, vector<4x256xf32>, vector<4x256xf32> -> vector<4x256xf32>
    %295 = arith.addf %286, %294 : vector<4x256xf32>
    %c15_i32_180 = arith.constant 15 : i32
    %296 = tpu.dynamic_rotate %278 by %c15_i32_180 dim 1 : vector<4x256xf32>, i32 -> vector<4x256xf32>
    %cst_181 = arith.constant 0.000000e+00 : f32
    %297 = vector.shape_cast %14 : vector<1x256xi1> to vector<1x256xi1>
    %298 = vector.broadcast %297 : vector<1x256xi1> to vector<4x256xi1>
    %299 = vector.broadcast %cst_181 : f32 to vector<4x256xf32>
    %300 = arith.select %298, %296, %299 : vector<4x256xi1>, vector<4x256xf32>
    %c2_182 = arith.constant 2 : index
    %c0_183 = arith.constant 0 : index
    %c0_184 = arith.constant 0 : index
    %301 = vector.load %arg4[%c2_182, %c0_183, %c0_184] : memref<9x4x4xf32, #tpu.memory_space<vmem>>, vector<1x4x4xf32>
    %302 = vector.shape_cast %301 : vector<1x4x4xf32> to vector<4x4xf32>
    %cst_185 = arith.constant dense<0.000000e+00> : vector<4x256xf32>
    %303 = tpu.matmul %302, %300, %cst_185 {dimension_numbers = #tpu.dot_dimension_numbers<[1], [0], [0], [1], [0, 0, 1, 1], [], []>} : vector<4x4xf32>, vector<4x256xf32>, vector<4x256xf32> -> vector<4x256xf32>
    %304 = arith.addf %295, %303 : vector<4x256xf32>
    %c1_i32_186 = arith.constant 1 : i32
    %305 = tpu.dynamic_rotate %278 by %c1_i32_186 dim 1 : vector<4x256xf32>, i32 -> vector<4x256xf32>
    %cst_187 = arith.constant 0.000000e+00 : f32
    %306 = vector.shape_cast %16 : vector<1x256xi1> to vector<1x256xi1>
    %307 = vector.broadcast %306 : vector<1x256xi1> to vector<4x256xi1>
    %308 = vector.broadcast %cst_187 : f32 to vector<4x256xf32>
    %309 = arith.select %307, %305, %308 : vector<4x256xi1>, vector<4x256xf32>
    %c3_188 = arith.constant 3 : index
    %c0_189 = arith.constant 0 : index
    %c0_190 = arith.constant 0 : index
    %310 = vector.load %arg4[%c3_188, %c0_189, %c0_190] : memref<9x4x4xf32, #tpu.memory_space<vmem>>, vector<1x4x4xf32>
    %311 = vector.shape_cast %310 : vector<1x4x4xf32> to vector<4x4xf32>
    %cst_191 = arith.constant dense<0.000000e+00> : vector<4x256xf32>
    %312 = tpu.matmul %311, %309, %cst_191 {dimension_numbers = #tpu.dot_dimension_numbers<[1], [0], [0], [1], [0, 0, 1, 1], [], []>} : vector<4x4xf32>, vector<4x256xf32>, vector<4x256xf32> -> vector<4x256xf32>
    %313 = arith.addf %304, %312 : vector<4x256xf32>
    %c4_192 = arith.constant 4 : index
    %c0_193 = arith.constant 0 : index
    %c0_194 = arith.constant 0 : index
    %314 = vector.load %arg4[%c4_192, %c0_193, %c0_194] : memref<9x4x4xf32, #tpu.memory_space<vmem>>, vector<1x4x4xf32>
    %315 = vector.shape_cast %314 : vector<1x4x4xf32> to vector<4x4xf32>
    %cst_195 = arith.constant dense<0.000000e+00> : vector<4x256xf32>
    %316 = tpu.matmul %315, %278, %cst_195 {dimension_numbers = #tpu.dot_dimension_numbers<[1], [0], [0], [1], [0, 0, 1, 1], [], []>} : vector<4x4xf32>, vector<4x256xf32>, vector<4x256xf32> -> vector<4x256xf32>
    %317 = arith.addf %313, %316 : vector<4x256xf32>
    %c255_i32_196 = arith.constant 255 : i32
    %318 = tpu.dynamic_rotate %278 by %c255_i32_196 dim 1 : vector<4x256xf32>, i32 -> vector<4x256xf32>
    %cst_197 = arith.constant 0.000000e+00 : f32
    %319 = vector.shape_cast %18 : vector<1x256xi1> to vector<1x256xi1>
    %320 = vector.broadcast %319 : vector<1x256xi1> to vector<4x256xi1>
    %321 = vector.broadcast %cst_197 : f32 to vector<4x256xf32>
    %322 = arith.select %320, %318, %321 : vector<4x256xi1>, vector<4x256xf32>
    %c5_198 = arith.constant 5 : index
    %c0_199 = arith.constant 0 : index
    %c0_200 = arith.constant 0 : index
    %323 = vector.load %arg4[%c5_198, %c0_199, %c0_200] : memref<9x4x4xf32, #tpu.memory_space<vmem>>, vector<1x4x4xf32>
    %324 = vector.shape_cast %323 : vector<1x4x4xf32> to vector<4x4xf32>
    %cst_201 = arith.constant dense<0.000000e+00> : vector<4x256xf32>
    %325 = tpu.matmul %324, %322, %cst_201 {dimension_numbers = #tpu.dot_dimension_numbers<[1], [0], [0], [1], [0, 0, 1, 1], [], []>} : vector<4x4xf32>, vector<4x256xf32>, vector<4x256xf32> -> vector<4x256xf32>
    %326 = arith.addf %317, %325 : vector<4x256xf32>
    %c241_i32_202 = arith.constant 241 : i32
    %327 = tpu.dynamic_rotate %278 by %c241_i32_202 dim 1 : vector<4x256xf32>, i32 -> vector<4x256xf32>
    %cst_203 = arith.constant 0.000000e+00 : f32
    %328 = vector.shape_cast %23 : vector<1x256xi1> to vector<1x256xi1>
    %329 = vector.broadcast %328 : vector<1x256xi1> to vector<4x256xi1>
    %330 = vector.broadcast %cst_203 : f32 to vector<4x256xf32>
    %331 = arith.select %329, %327, %330 : vector<4x256xi1>, vector<4x256xf32>
    %c6_204 = arith.constant 6 : index
    %c0_205 = arith.constant 0 : index
    %c0_206 = arith.constant 0 : index
    %332 = vector.load %arg4[%c6_204, %c0_205, %c0_206] : memref<9x4x4xf32, #tpu.memory_space<vmem>>, vector<1x4x4xf32>
    %333 = vector.shape_cast %332 : vector<1x4x4xf32> to vector<4x4xf32>
    %cst_207 = arith.constant dense<0.000000e+00> : vector<4x256xf32>
    %334 = tpu.matmul %333, %331, %cst_207 {dimension_numbers = #tpu.dot_dimension_numbers<[1], [0], [0], [1], [0, 0, 1, 1], [], []>} : vector<4x4xf32>, vector<4x256xf32>, vector<4x256xf32> -> vector<4x256xf32>
    %335 = arith.addf %326, %334 : vector<4x256xf32>
    %c240_i32_208 = arith.constant 240 : i32
    %336 = tpu.dynamic_rotate %278 by %c240_i32_208 dim 1 : vector<4x256xf32>, i32 -> vector<4x256xf32>
    %cst_209 = arith.constant 0.000000e+00 : f32
    %337 = vector.shape_cast %25 : vector<1x256xi1> to vector<1x256xi1>
    %338 = vector.broadcast %337 : vector<1x256xi1> to vector<4x256xi1>
    %339 = vector.broadcast %cst_209 : f32 to vector<4x256xf32>
    %340 = arith.select %338, %336, %339 : vector<4x256xi1>, vector<4x256xf32>
    %c7_210 = arith.constant 7 : index
    %c0_211 = arith.constant 0 : index
    %c0_212 = arith.constant 0 : index
    %341 = vector.load %arg4[%c7_210, %c0_211, %c0_212] : memref<9x4x4xf32, #tpu.memory_space<vmem>>, vector<1x4x4xf32>
    %342 = vector.shape_cast %341 : vector<1x4x4xf32> to vector<4x4xf32>
    %cst_213 = arith.constant dense<0.000000e+00> : vector<4x256xf32>
    %343 = tpu.matmul %342, %340, %cst_213 {dimension_numbers = #tpu.dot_dimension_numbers<[1], [0], [0], [1], [0, 0, 1, 1], [], []>} : vector<4x4xf32>, vector<4x256xf32>, vector<4x256xf32> -> vector<4x256xf32>
    %344 = arith.addf %335, %343 : vector<4x256xf32>
    %c239_i32_214 = arith.constant 239 : i32
    %345 = tpu.dynamic_rotate %278 by %c239_i32_214 dim 1 : vector<4x256xf32>, i32 -> vector<4x256xf32>
    %cst_215 = arith.constant 0.000000e+00 : f32
    %346 = vector.shape_cast %30 : vector<1x256xi1> to vector<1x256xi1>
    %347 = vector.broadcast %346 : vector<1x256xi1> to vector<4x256xi1>
    %348 = vector.broadcast %cst_215 : f32 to vector<4x256xf32>
    %349 = arith.select %347, %345, %348 : vector<4x256xi1>, vector<4x256xf32>
    %c8_216 = arith.constant 8 : index
    %c0_217 = arith.constant 0 : index
    %c0_218 = arith.constant 0 : index
    %350 = vector.load %arg4[%c8_216, %c0_217, %c0_218] : memref<9x4x4xf32, #tpu.memory_space<vmem>>, vector<1x4x4xf32>
    %351 = vector.shape_cast %350 : vector<1x4x4xf32> to vector<4x4xf32>
    %cst_219 = arith.constant dense<0.000000e+00> : vector<4x256xf32>
    %352 = tpu.matmul %351, %349, %cst_219 {dimension_numbers = #tpu.dot_dimension_numbers<[1], [0], [0], [1], [0, 0, 1, 1], [], []>} : vector<4x4xf32>, vector<4x256xf32>, vector<4x256xf32> -> vector<4x256xf32>
    %353 = arith.addf %344, %352 : vector<4x256xf32>
    %c0_220 = arith.constant 0 : index
    %c0_221 = arith.constant 0 : index
    %354 = vector.load %arg5[%c0_220, %c0_221] : memref<4x1xf32, #tpu.memory_space<vmem>>, vector<4x1xf32>
    %355 = vector.broadcast %354 : vector<4x1xf32> to vector<4x256xf32>
    %356 = arith.addf %353, %355 : vector<4x256xf32>
    %cst_222 = arith.constant 0.000000e+00 : f32
    %357 = vector.broadcast %cst_222 : f32 to vector<4x256xf32>
    %358 = arith.maximumf %356, %357 : vector<4x256xf32>
    %359 = arith.addf %358, %198 : vector<4x256xf32>
    %c1_223 = arith.constant 1 : index
    %c0_224 = arith.constant 0 : index
    %c0_225 = arith.constant 0 : index
    %360 = vector.load %arg6[%c1_223, %c0_224, %c0_225] : memref<2x4x256xf32, #tpu.memory_space<vmem>>, vector<1x4x256xf32>
    %361 = vector.shape_cast %360 : vector<1x4x256xf32> to vector<4x256xf32>
    %362 = vector.shape_cast %359 : vector<4x256xf32> to vector<1x4x256xf32>
    tpu.vector_store %arg6[%c1_223, %c0_224, %c0_225], %362 {strides = array<i32>} : memref<2x4x256xf32, #tpu.memory_space<vmem>>, vector<1x4x256xf32>,
    return
  }
  func.func @transform_0(%arg0: i32) -> (i32, i32, i32) {
    %c0_i32 = arith.constant 0 : i32
    %c0_i32_0 = arith.constant 0 : i32
    %c0_i32_1 = arith.constant 0 : i32
    return %arg0, %c0_i32, %c0_i32_0 : i32, i32, i32
  }
  func.func @transform_1(%arg0: i32) -> (i32, i32, i32) {
    %c0_i32 = arith.constant 0 : i32
    %c0_i32_0 = arith.constant 0 : i32
    %c0_i32_1 = arith.constant 0 : i32
    %c0_i32_2 = arith.constant 0 : i32
    return %c0_i32, %c0_i32_0, %c0_i32_1 : i32, i32, i32
  }
  func.func @transform_2(%arg0: i32) -> (i32, i32) {
    %c0_i32 = arith.constant 0 : i32
    %c0_i32_0 = arith.constant 0 : i32
    %c0_i32_1 = arith.constant 0 : i32
    return %c0_i32, %c0_i32_0 : i32, i32
  }
  func.func @transform_3(%arg0: i32) -> (i32, i32, i32) {
    %c0_i32 = arith.constant 0 : i32
    %c0_i32_0 = arith.constant 0 : i32
    %c0_i32_1 = arith.constant 0 : i32
    %c0_i32_2 = arith.constant 0 : i32
    return %c0_i32, %c0_i32_0, %c0_i32_1 : i32, i32, i32
  }
  func.func @transform_4(%arg0: i32) -> (i32, i32) {
    %c0_i32 = arith.constant 0 : i32
    %c0_i32_0 = arith.constant 0 : i32
    %c0_i32_1 = arith.constant 0 : i32
    return %c0_i32, %c0_i32_0 : i32, i32
  }
  func.func @transform_5(%arg0: i32) -> (i32, i32, i32) {
    %c0_i32 = arith.constant 0 : i32
    %c0_i32_0 = arith.constant 0 : i32
    %c0_i32_1 = arith.constant 0 : i32
    return %arg0, %c0_i32, %c0_i32_0 : i32, i32, i32
  }
}

</mosaic_0001>

<llo_original>
// kernel: tpu_custom_call.1
$region0: #{tpu_custom_call.1}
  #allocation0 [shape = 'u32[]', space=smem, size = 0x4, offset = 0x4, fixed_abs, tag = 'smem constant byte address 0x4 - core index']
  #allocation1 [shape = 'u32[72,128]{1,0:T(1,128)}', space=vmem, size = 0x9000, scoped, tag = 'internal scratch']
  %s0 = inlined_call_operand.vmem [shape: f32[2,4,256], index: 0, kind: input, shape index: {}]
  %s1 = inlined_call_operand.vmem [shape: f32[9,4,4], index: 1, kind: input, shape index: {}]
  %s2 = inlined_call_operand.vmem [shape: f32[4,1], index: 2, kind: input, shape index: {}]
  %s3 = inlined_call_operand.vmem [shape: f32[9,4,4], index: 3, kind: input, shape index: {}]
  %s4 = inlined_call_operand.vmem [shape: f32[4,1], index: 4, kind: input, shape index: {}]
  %s5 = inlined_call_operand.hbm [shape: f32[2,4,256], index: 5, kind: output, shape index: {}]
  %s6 = sld [smem:[#allocation0]]
  $region30: #{tpu_custom_call.1} parent=0
    _
  %s8 = ssub.s32 1, %s6
  %s9 = scalar_select 0, %s8, %s6
  $region1: #{tpu_custom_call.1} parent=0
    #allocation2 [shape = 'u8[8192]{0}', space=vmem, size = 0x2000, scoped, tag = 'output window, operand 0, single buffered']
    #allocation3 [shape = 's32[1]{0}', space=sflag, size = 0x4, scoped, tag = 'scoped memory for tpu_custom_call.1']
    %10 = vsyncpa [#allocation3], 0
    // Predicated region
    $region2: #{tpu_custom_call.1} parent=1 // pred_check
      _
    $region3: #{tpu_custom_call.1} parent=1 // pred_check_branch
      %12 = sbr.rel (0) target = $region5
    $region4: #{tpu_custom_call.1} parent=1 // pred_region
      _
    $region5: #{tpu_custom_call.1} parent=1 // pred_fallthru
      _
    // Predicated region
    $region6: #{tpu_custom_call.1} parent=1 // pred_check
      _
    $region7: #{tpu_custom_call.1} parent=1 // pred_check_branch
      %14 = sbr.rel (0) target = $region9
    $region8: #{tpu_custom_call.1} parent=1 // pred_region
      _
    $region9: #{tpu_custom_call.1} parent=1 // pred_fallthru
      _
    // Predicated region
    $region10: #{tpu_custom_call.1} parent=1 // pred_check
      _
    $region11: #{tpu_custom_call.1} parent=1 // pred_check_branch
      %16 = sbr.rel (0) target = $region13
    $region12: #{tpu_custom_call.1} parent=1 // pred_region
      _
    $region13: #{tpu_custom_call.1} parent=1 // pred_fallthru
      _
    // Predicated region
    $region14: #{tpu_custom_call.1} parent=1 // pred_check
      _
    $region15: #{tpu_custom_call.1} parent=1 // pred_check_branch
      %18 = sbr.rel (0) target = $region17
    $region16: #{tpu_custom_call.1} parent=1 // pred_region
      _
    $region17: #{tpu_custom_call.1} parent=1 // pred_fallthru
      _
    // Predicated region
    $region18: #{tpu_custom_call.1} parent=1 // pred_check
      _
    $region19: #{tpu_custom_call.1} parent=1 // pred_check_branch
      %20 = sbr.rel (0) target = $region21
    $region20: #{tpu_custom_call.1} parent=1 // pred_region
      _
    $region21: #{tpu_custom_call.1} parent=1 // pred_fallthru
      _
    %v21 = vlaneseq
    %v22 = vand.u32 %v21, 127
    %v23 = vadd.s32 %v22, 128
    %24 = vrot.lane.b32.xlu0 %v22, 16
    %v25 = vpop.permute.xlu0 %24
    %26 = vrot.lane.b32.xlu0 %v22, 32
    %v27 = vpop.permute.xlu0 %26
    %28 = vrot.lane.b32.xlu0 %v22, 48
    %v29 = vpop.permute.xlu0 %28
    %30 = vrot.lane.b32.xlu0 %v22, 64
    %v31 = vpop.permute.xlu0 %30
    %32 = vrot.lane.b32.xlu0 %v22, 80
    %v33 = vpop.permute.xlu0 %32
    %34 = vrot.lane.b32.xlu0 %v22, 96
    %v35 = vpop.permute.xlu0 %34
    %36 = vrot.lane.b32.xlu0 %v22, 112
    %v37 = vpop.permute.xlu0 %36
    %vm38 = vcmask 130048
    %v39 = vsel %vm38, %v22, %v25
    %vm40 = vcmask 261120
    %v41 = vsel %vm40, %v39, %v27
    %vm42 = vcmask 392192
    %v43 = vsel %vm42, %v41, %v29
    %vm44 = vcmask 523264
    %v45 = vsel %vm44, %v43, %v31
    %vm46 = vcmask 654336
    %v47 = vsel %vm46, %v45, %v33
    %vm48 = vcmask 785408
    %v49 = vsel %vm48, %v47, %v35
    %vm50 = vcmask 916480
    %v51 = vsel %vm50, %v49, %v37
    %vm52 = vcmp.ge.s32.totalorder %v22, 16
    %vm53 = vcmp.ge.s32.totalorder %v23, 16
    %vm54 = vcmp.ge.s32.totalorder %v51, 1
    %vm55 = vmand %vm52, %vm54
    %vm56 = vmand %vm53, %vm54
    %vm57 = vcmp.lt.s32.totalorder %v51, 15
    %vm58 = vmand %vm52, %vm57
    %vm59 = vmand %vm53, %vm57
    %vm60 = vcmp.lt.s32.totalorder %v22, 240
    %vm61 = vcmp.lt.s32.totalorder %v23, 240
    %vm62 = vmand %vm60, %vm54
    %vm63 = vmand %vm61, %vm54
    %vm64 = vmand %vm60, %vm57
    %vm65 = vmand %vm61, %vm57
    %v66 = vld [vmem:[%s0] sm:$0xff]
    %68 = vst [vmem:[#allocation1] ss:$2 sm:$0xff] %v66
    %v69 = vld.sshfl [vmem:[#allocation1] sm:$0xff pattern:$0x75316420]
    %v70 = vld.sshfl [vmem:[#allocation1 + $0x8] sm:$0xff pattern:$0x75316420]
    %73 = vrot.lane.b32.xlu0 %v69, 17
    %v74 = vpop.permute.xlu0 %73
    %75 = vrot.lane.b32.xlu0 %v70, 17
    %v76 = vpop.permute.xlu0 %75
    %vm77 = vcmp.lt.s32.totalorder %v22, 17
    %v78 = vsel %vm77, %v74, %v76
    %v79 = vsel %vm77, %v76, %v74
    %v80 = vsel %vm55, 1, 0
    %v81 = vsel %vm56, 1, 0
    %v82 = vperm.slane %v80, 0
    %v83 = vperm.slane %v81, 0
    %vm84 = vcmp.eq.s32.totalorder %v82, 1
    %vm85 = vcmp.eq.s32.totalorder %v83, 1
    %v86 = vsel %vm84, %v79, 0.0
    %v87 = vsel %vm85, %v78, 0.0
    %v88 = vld [vmem:[%s1] sm:$0xf]
    %89 = vst [vmem:[#allocation1] ss:$2 sm:$0xff] %v66
    %v90 = vld.sshfl [vmem:[#allocation1] sm:$0xff pattern:$0x75316420]
    %v91 = vld.sshfl [vmem:[#allocation1 + $0x8] sm:$0xff pattern:$0x75316420]
    %94 = vrot.lane.b32.xlu0 %v90, 16
    %v95 = vpop.permute.xlu0 %94
    %96 = vrot.lane.b32.xlu0 %v91, 16
    %v97 = vpop.permute.xlu0 %96
    %vm98 = vcmp.lt.s32.totalorder %v22, 16
    %v99 = vsel %vm98, %v95, %v97
    %v100 = vsel %vm98, %v97, %v95
    %v101 = vsel %vm52, 1, 0
    %v102 = vsel %vm53, 1, 0
    %vm103 = vcmp.eq.s32.totalorder %v101, 1
    %vm104 = vcmp.eq.s32.totalorder %v102, 1
    %v105 = vsel %vm103, %v100, 0.0
    %v106 = vsel %vm104, %v99, 0.0
    %s107 = scalar_lea.vmem %s1, 4
    %v108 = vld [vmem:[%s107] sm:$0xf]
    %vm109 = vcmask 31744
    %v111 = vsel %vm109, %v108, 0
    %vm113 = vcmask 1043456
    %v115 = vsel %vm113, %v105, 0
    %v118 = vsel %vm113, %v106, 0
    %120 = vmatpush.msra.mxu0 0.0
    %121 = vmatpush.msra.mxu0 0.0
    %122 = vmatpush.msra.mxu0 0.0
    %123 = vmatpush.msra.mxu0 0.0
    %124 = vmatpush.msra.mxu0 0.0
    %125 = vmatpush.msra.mxu0 0.0
    %126 = vmatpush.msra.mxu0 0.0
    %127 = vmatpush.msra.mxu0 0.0
    %128 = vmatpush.msra.mxu0 0.0
    %129 = vmatpush.msra.mxu0 0.0
    %130 = vmatpush.msra.mxu0 0.0
    %131 = vmatpush.msra.mxu0 0.0
    %132 = vmatpush.msra.mxu0 0.0
    %133 = vmatpush.msra.mxu0 0.0
    %134 = vmatpush.msra.mxu0 0.0
    %135 = vmatpush.msra.mxu0 %v115
    %136 = vmatmul.f32.gmra.mxu0 %v111
    %v137 = vpop.f32.mrf.mxu0
    %v138 = vadd.f32 0.0, %v137
    %139 = vdwg.mxu0
    %140 = vmatpush.msra.mxu0 0.0
    %141 = vmatpush.msra.mxu0 0.0
    %142 = vmatpush.msra.mxu0 0.0
    %143 = vmatpush.msra.mxu0 0.0
    %144 = vmatpush.msra.mxu0 0.0
    %145 = vmatpush.msra.mxu0 0.0
    %146 = vmatpush.msra.mxu0 0.0
    %147 = vmatpush.msra.mxu0 0.0
    %148 = vmatpush.msra.mxu0 0.0
    %149 = vmatpush.msra.mxu0 0.0
    %150 = vmatpush.msra.mxu0 0.0
    %151 = vmatpush.msra.mxu0 0.0
    %152 = vmatpush.msra.mxu0 0.0
    %153 = vmatpush.msra.mxu0 0.0
    %154 = vmatpush.msra.mxu0 0.0
    %155 = vmatpush.msra.mxu0 %v118
    %156 = vmatmul.f32.gmra.mxu0 %v111
    %v157 = vpop.f32.mrf.mxu0
    %v158 = vadd.f32 0.0, %v157
    %159 = vdwg.mxu0
    %v161 = vsel %vm109, %v88, 0
    %v164 = vsel %vm113, %v86, 0
    %v167 = vsel %vm113, %v87, 0
    %169 = vmatpush.msra.mxu0 0.0
    %170 = vmatpush.msra.mxu0 0.0
    %171 = vmatpush.msra.mxu0 0.0
    %172 = vmatpush.msra.mxu0 0.0
    %173 = vmatpush.msra.mxu0 0.0
    %174 = vmatpush.msra.mxu0 0.0
    %175 = vmatpush.msra.mxu0 0.0
    %176 = vmatpush.msra.mxu0 0.0
    %177 = vmatpush.msra.mxu0 0.0
    %178 = vmatpush.msra.mxu0 0.0
    %179 = vmatpush.msra.mxu0 0.0
    %180 = vmatpush.msra.mxu0 0.0
    %181 = vmatpush.msra.mxu0 0.0
    %182 = vmatpush.msra.mxu0 0.0
    %183 = vmatpush.msra.mxu0 0.0
    %184 = vmatpush.msra.mxu0 %v164
    %185 = vmatmul.f32.gmra.mxu0 %v161
    %v186 = vpop.f32.mrf.mxu0
    %v187 = vadd.f32 %v138, %v186
    %188 = vdwg.mxu0
    %189 = vmatpush.msra.mxu0 0.0
    %190 = vmatpush.msra.mxu0 0.0
    %191 = vmatpush.msra.mxu0 0.0
    %192 = vmatpush.msra.mxu0 0.0
    %193 = vmatpush.msra.mxu0 0.0
    %194 = vmatpush.msra.mxu0 0.0
    %195 = vmatpush.msra.mxu0 0.0
    %196 = vmatpush.msra.mxu0 0.0
    %197 = vmatpush.msra.mxu0 0.0
    %198 = vmatpush.msra.mxu0 0.0
    %199 = vmatpush.msra.mxu0 0.0
    %200 = vmatpush.msra.mxu0 0.0
    %201 = vmatpush.msra.mxu0 0.0
    %202 = vmatpush.msra.mxu0 0.0
    %203 = vmatpush.msra.mxu0 0.0
    %204 = vmatpush.msra.mxu0 %v167
    %205 = vmatmul.f32.gmra.mxu0 %v161
    %v206 = vpop.f32.mrf.mxu0
    %v207 = vadd.f32 %v158, %v206
    %208 = vdwg.mxu0
    %209 = vst [vmem:[#allocation1] ss:$2 sm:$0xff] %v66
    %v210 = vld.sshfl [vmem:[#allocation1] sm:$0xff pattern:$0x75316420]
    %v211 = vld.sshfl [vmem:[#allocation1 + $0x8] sm:$0xff pattern:$0x75316420]
    %214 = vrot.lane.b32.xlu0 %v210, 15
    %v215 = vpop.permute.xlu0 %214
    %216 = vrot.lane.b32.xlu0 %v211, 15
    %v217 = vpop.permute.xlu0 %216
    %vm218 = vcmp.lt.s32.totalorder %v22, 15
    %v219 = vsel %vm218, %v215, %v217
    %v220 = vsel %vm218, %v217, %v215
    %v221 = vsel %vm58, 1, 0
    %v222 = vsel %vm59, 1, 0
    %v223 = vperm.slane %v221, 0
    %v224 = vperm.slane %v222, 0
    %vm225 = vcmp.eq.s32.totalorder %v223, 1
    %vm226 = vcmp.eq.s32.totalorder %v224, 1
    %v227 = vsel %vm225, %v220, 0.0
    %v228 = vsel %vm226, %v219, 0.0
    %s229 = scalar_lea.vmem %s1, 8
    %v230 = vld [vmem:[%s229] sm:$0xf]
    %v232 = vsel %vm109, %v230, 0
    %v235 = vsel %vm113, %v227, 0
    %v238 = vsel %vm113, %v228, 0
    %240 = vmatpush.msra.mxu0 0.0
    %241 = vmatpush.msra.mxu0 0.0
    %242 = vmatpush.msra.mxu0 0.0
    %243 = vmatpush.msra.mxu0 0.0
    %244 = vmatpush.msra.mxu0 0.0
    %245 = vmatpush.msra.mxu0 0.0
    %246 = vmatpush.msra.mxu0 0.0
    %247 = vmatpush.msra.mxu0 0.0
    %248 = vmatpush.msra.mxu0 0.0
    %249 = vmatpush.msra.mxu0 0.0
    %250 = vmatpush.msra.mxu0 0.0
    %251 = vmatpush.msra.mxu0 0.0
    %252 = vmatpush.msra.mxu0 0.0
    %253 = vmatpush.msra.mxu0 0.0
    %254 = vmatpush.msra.mxu0 0.0
    %255 = vmatpush.msra.mxu0 %v235
    %256 = vmatmul.f32.gmra.mxu0 %v232
    %v257 = vpop.f32.mrf.mxu0
    %v258 = vadd.f32 0.0, %v257
    %259 = vdwg.mxu0
    %260 = vmatpush.msra.mxu0 0.0
    %261 = vmatpush.msra.mxu0 0.0
    %262 = vmatpush.msra.mxu0 0.0
    %263 = vmatpush.msra.mxu0 0.0
    %264 = vmatpush.msra.mxu0 0.0
    %265 = vmatpush.msra.mxu0 0.0
    %266 = vmatpush.msra.mxu0 0.0
    %267 = vmatpush.msra.mxu0 0.0
    %268 = vmatpush.msra.mxu0 0.0
    %269 = vmatpush.msra.mxu0 0.0
    %270 = vmatpush.msra.mxu0 0.0
    %271 = vmatpush.msra.mxu0 0.0
    %272 = vmatpush.msra.mxu0 0.0
    %273 = vmatpush.msra.mxu0 0.0
    %274 = vmatpush.msra.mxu0 0.0
    %275 = vmatpush.msra.mxu0 %v238
    %276 = vmatmul.f32.gmra.mxu0 %v232
    %v277 = vpop.f32.mrf.mxu0
    %v278 = vadd.f32 0.0, %v277
    %279 = vdwg.mxu0
    %v280 = vadd.f32 %v187, %v258
    %v281 = vadd.f32 %v207, %v278
    %282 = vst [vmem:[#allocation1] ss:$2 sm:$0xff] %v66
    %v283 = vld.sshfl [vmem:[#allocation1] sm:$0xff pattern:$0x75316420]
    %v284 = vld.sshfl [vmem:[#allocation1 + $0x8] sm:$0xff pattern:$0x75316420]
    %287 = vrot.lane.b32.xlu0 %v283, 1
    %v288 = vpop.permute.xlu0 %287
    %289 = vrot.lane.b32.xlu0 %v284, 1
    %v290 = vpop.permute.xlu0 %289
    %vm291 = vcmp.lt.s32.totalorder %v22, 1
    %v292 = vsel %vm291, %v288, %v290
    %v293 = vsel %vm291, %v290, %v288
    %v294 = vsel %vm54, 1, 0
    %v295 = vperm.slane %v294, 0
    %vm296 = vcmp.eq.s32.totalorder %v295, 1
    %v297 = vsel %vm296, %v293, 0.0
    %v298 = vsel %vm296, %v292, 0.0
    %s299 = scalar_lea.vmem %s1, 12
    %v300 = vld [vmem:[%s299] sm:$0xf]
    %v302 = vsel %vm109, %v300, 0
    %v305 = vsel %vm113, %v297, 0
    %v308 = vsel %vm113, %v298, 0
    %310 = vmatpush.msra.mxu0 0.0
    %311 = vmatpush.msra.mxu0 0.0
    %312 = vmatpush.msra.mxu0 0.0
    %313 = vmatpush.msra.mxu0 0.0
    %314 = vmatpush.msra.mxu0 0.0
    %315 = vmatpush.msra.mxu0 0.0
    %316 = vmatpush.msra.mxu0 0.0
    %317 = vmatpush.msra.mxu0 0.0
    %318 = vmatpush.msra.mxu0 0.0
    %319 = vmatpush.msra.mxu0 0.0
    %320 = vmatpush.msra.mxu0 0.0
    %321 = vmatpush.msra.mxu0 0.0
    %322 = vmatpush.msra.mxu0 0.0
    %323 = vmatpush.msra.mxu0 0.0
    %324 = vmatpush.msra.mxu0 0.0
    %325 = vmatpush.msra.mxu0 %v305
    %326 = vmatmul.f32.gmra.mxu0 %v302
    %v327 = vpop.f32.mrf.mxu0
    %v328 = vadd.f32 0.0, %v327
    %329 = vdwg.mxu0
    %330 = vmatpush.msra.mxu0 0.0
    %331 = vmatpush.msra.mxu0 0.0
    %332 = vmatpush.msra.mxu0 0.0
    %333 = vmatpush.msra.mxu0 0.0
    %334 = vmatpush.msra.mxu0 0.0
    %335 = vmatpush.msra.mxu0 0.0
    %336 = vmatpush.msra.mxu0 0.0
    %337 = vmatpush.msra.mxu0 0.0
    %338 = vmatpush.msra.mxu0 0.0
    %339 = vmatpush.msra.mxu0 0.0
    %340 = vmatpush.msra.mxu0 0.0
    %341 = vmatpush.msra.mxu0 0.0
    %342 = vmatpush.msra.mxu0 0.0
    %343 = vmatpush.msra.mxu0 0.0
    %344 = vmatpush.msra.mxu0 0.0
    %345 = vmatpush.msra.mxu0 %v308
    %346 = vmatmul.f32.gmra.mxu0 %v302
    %v347 = vpop.f32.mrf.mxu0
    %v348 = vadd.f32 0.0, %v347
    %349 = vdwg.mxu0
    %v350 = vadd.f32 %v280, %v328
    %v351 = vadd.f32 %v281, %v348
    %s352 = scalar_lea.vmem %s1, 16
    %v353 = vld [vmem:[%s352] sm:$0xf]
    %354 = vst [vmem:[#allocation1] ss:$2 sm:$0xff] %v66
    %v355 = vld.sshfl [vmem:[#allocation1] sm:$0xff pattern:$0x75316420]
    %v356 = vld.sshfl [vmem:[#allocation1 + $0x8] sm:$0xff pattern:$0x75316420]
    %v358 = vsel %vm109, %v353, 0
    %v360 = vsel %vm113, %v355, 0
    %v362 = vsel %vm113, %v356, 0
    %364 = vmatpush.msra.mxu0 0.0
    %365 = vmatpush.msra.mxu0 0.0
    %366 = vmatpush.msra.mxu0 0.0
    %367 = vmatpush.msra.mxu0 0.0
    %368 = vmatpush.msra.mxu0 0.0
    %369 = vmatpush.msra.mxu0 0.0
    %370 = vmatpush.msra.mxu0 0.0
    %371 = vmatpush.msra.mxu0 0.0
    %372 = vmatpush.msra.mxu0 0.0
    %373 = vmatpush.msra.mxu0 0.0
    %374 = vmatpush.msra.mxu0 0.0
    %375 = vmatpush.msra.mxu0 0.0
    %376 = vmatpush.msra.mxu0 0.0
    %377 = vmatpush.msra.mxu0 0.0
    %378 = vmatpush.msra.mxu0 0.0
    %379 = vmatpush.msra.mxu0 %v360
    %380 = vmatmul.f32.gmra.mxu0 %v358
    %v381 = vpop.f32.mrf.mxu0
    %v382 = vadd.f32 0.0, %v381
    %383 = vdwg.mxu0
    %384 = vmatpush.msra.mxu0 0.0
    %385 = vmatpush.msra.mxu0 0.0
    %386 = vmatpush.msra.mxu0 0.0
    %387 = vmatpush.msra.mxu0 0.0
    %388 = vmatpush.msra.mxu0 0.0
    %389 = vmatpush.msra.mxu0 0.0
    %390 = vmatpush.msra.mxu0 0.0
    %391 = vmatpush.msra.mxu0 0.0
    %392 = vmatpush.msra.mxu0 0.0
    %393 = vmatpush.msra.mxu0 0.0
    %394 = vmatpush.msra.mxu0 0.0
    %395 = vmatpush.msra.mxu0 0.0
    %396 = vmatpush.msra.mxu0 0.0
    %397 = vmatpush.msra.mxu0 0.0
    %398 = vmatpush.msra.mxu0 0.0
    %399 = vmatpush.msra.mxu0 %v362
    %400 = vmatmul.f32.gmra.mxu0 %v358
    %v401 = vpop.f32.mrf.mxu0
    %v402 = vadd.f32 0.0, %v401
    %403 = vdwg.mxu0
    %v404 = vadd.f32 %v350, %v382
    %v405 = vadd.f32 %v351, %v402
    %406 = vst [vmem:[#allocation1] ss:$2 sm:$0xff] %v66
    %v407 = vld.sshfl [vmem:[#allocation1] sm:$0xff pattern:$0x75316420]
    %v408 = vld.sshfl [vmem:[#allocation1 + $0x8] sm:$0xff pattern:$0x75316420]
    %411 = vrot.lane.b32.xlu0 %v407, 127
    %v412 = vpop.permute.xlu0 %411
    %413 = vrot.lane.b32.xlu0 %v408, 127
    %v414 = vpop.permute.xlu0 %413
    %vm415 = vcmp.lt.s32.totalorder %v22, 127
    %v416 = vsel %vm415, %v412, %v414
    %v417 = vsel %vm415, %v414, %v412
    %v418 = vsel %vm57, 1, 0
    %v419 = vperm.slane %v418, 0
    %vm420 = vcmp.eq.s32.totalorder %v419, 1
    %v421 = vsel %vm420, %v416, 0.0
    %v422 = vsel %vm420, %v417, 0.0
    %s423 = scalar_lea.vmem %s1, 20
    %v424 = vld [vmem:[%s423] sm:$0xf]
    %v426 = vsel %vm109, %v424, 0
    %v429 = vsel %vm113, %v421, 0
    %v432 = vsel %vm113, %v422, 0
    %434 = vmatpush.msra.mxu0 0.0
    %435 = vmatpush.msra.mxu0 0.0
    %436 = vmatpush.msra.mxu0 0.0
    %437 = vmatpush.msra.mxu0 0.0
    %438 = vmatpush.msra.mxu0 0.0
    %439 = vmatpush.msra.mxu0 0.0
    %440 = vmatpush.msra.mxu0 0.0
    %441 = vmatpush.msra.mxu0 0.0
    %442 = vmatpush.msra.mxu0 0.0
    %443 = vmatpush.msra.mxu0 0.0
    %444 = vmatpush.msra.mxu0 0.0
    %445 = vmatpush.msra.mxu0 0.0
    %446 = vmatpush.msra.mxu0 0.0
    %447 = vmatpush.msra.mxu0 0.0
    %448 = vmatpush.msra.mxu0 0.0
    %449 = vmatpush.msra.mxu0 %v429
    %450 = vmatmul.f32.gmra.mxu0 %v426
    %v451 = vpop.f32.mrf.mxu0
    %v452 = vadd.f32 0.0, %v451
    %453 = vdwg.mxu0
    %454 = vmatpush.msra.mxu0 0.0
    %455 = vmatpush.msra.mxu0 0.0
    %456 = vmatpush.msra.mxu0 0.0
    %457 = vmatpush.msra.mxu0 0.0
    %458 = vmatpush.msra.mxu0 0.0
    %459 = vmatpush.msra.mxu0 0.0
    %460 = vmatpush.msra.mxu0 0.0
    %461 = vmatpush.msra.mxu0 0.0
    %462 = vmatpush.msra.mxu0 0.0
    %463 = vmatpush.msra.mxu0 0.0
    %464 = vmatpush.msra.mxu0 0.0
    %465 = vmatpush.msra.mxu0 0.0
    %466 = vmatpush.msra.mxu0 0.0
    %467 = vmatpush.msra.mxu0 0.0
    %468 = vmatpush.msra.mxu0 0.0
    %469 = vmatpush.msra.mxu0 %v432
    %470 = vmatmul.f32.gmra.mxu0 %v426
    %v471 = vpop.f32.mrf.mxu0
    %v472 = vadd.f32 0.0, %v471
    %473 = vdwg.mxu0
    %v474 = vadd.f32 %v404, %v452
    %v475 = vadd.f32 %v405, %v472
    %476 = vst [vmem:[#allocation1] ss:$2 sm:$0xff] %v66
    %v477 = vld.sshfl [vmem:[#allocation1] sm:$0xff pattern:$0x75316420]
    %v478 = vld.sshfl [vmem:[#allocation1 + $0x8] sm:$0xff pattern:$0x75316420]
    %481 = vrot.lane.b32.xlu0 %v477, 113
    %v482 = vpop.permute.xlu0 %481
    %483 = vrot.lane.b32.xlu0 %v478, 113
    %v484 = vpop.permute.xlu0 %483
    %vm485 = vcmp.lt.s32.totalorder %v22, 113
    %v486 = vsel %vm485, %v482, %v484
    %v487 = vsel %vm485, %v484, %v482
    %v488 = vsel %vm62, 1, 0
    %v489 = vsel %vm63, 1, 0
    %v490 = vperm.slane %v488, 0
    %v491 = vperm.slane %v489, 0
    %vm492 = vcmp.eq.s32.totalorder %v490, 1
    %vm493 = vcmp.eq.s32.totalorder %v491, 1
    %v494 = vsel %vm492, %v486, 0.0
    %v495 = vsel %vm493, %v487, 0.0
    %s496 = scalar_lea.vmem %s1, 24
    %v497 = vld [vmem:[%s496] sm:$0xf]
    %v499 = vsel %vm109, %v497, 0
    %v502 = vsel %vm113, %v494, 0
    %v505 = vsel %vm113, %v495, 0
    %507 = vmatpush.msra.mxu0 0.0
    %508 = vmatpush.msra.mxu0 0.0
    %509 = vmatpush.msra.mxu0 0.0
    %510 = vmatpush.msra.mxu0 0.0
    %511 = vmatpush.msra.mxu0 0.0
    %512 = vmatpush.msra.mxu0 0.0
    %513 = vmatpush.msra.mxu0 0.0
    %514 = vmatpush.msra.mxu0 0.0
    %515 = vmatpush.msra.mxu0 0.0
    %516 = vmatpush.msra.mxu0 0.0
    %517 = vmatpush.msra.mxu0 0.0
    %518 = vmatpush.msra.mxu0 0.0
    %519 = vmatpush.msra.mxu0 0.0
    %520 = vmatpush.msra.mxu0 0.0
    %521 = vmatpush.msra.mxu0 0.0
    %522 = vmatpush.msra.mxu0 %v502
    %523 = vmatmul.f32.gmra.mxu0 %v499
    %v524 = vpop.f32.mrf.mxu0
    %v525 = vadd.f32 0.0, %v524
    %526 = vdwg.mxu0
    %527 = vmatpush.msra.mxu0 0.0
    %528 = vmatpush.msra.mxu0 0.0
    %529 = vmatpush.msra.mxu0 0.0
    %530 = vmatpush.msra.mxu0 0.0
    %531 = vmatpush.msra.mxu0 0.0
    %532 = vmatpush.msra.mxu0 0.0
    %533 = vmatpush.msra.mxu0 0.0
    %534 = vmatpush.msra.mxu0 0.0
    %535 = vmatpush.msra.mxu0 0.0
    %536 = vmatpush.msra.mxu0 0.0
    %537 = vmatpush.msra.mxu0 0.0
    %538 = vmatpush.msra.mxu0 0.0
    %539 = vmatpush.msra.mxu0 0.0
    %540 = vmatpush.msra.mxu0 0.0
    %541 = vmatpush.msra.mxu0 0.0
    %542 = vmatpush.msra.mxu0 %v505
    %543 = vmatmul.f32.gmra.mxu0 %v499
    %v544 = vpop.f32.mrf.mxu0
    %v545 = vadd.f32 0.0, %v544
    %546 = vdwg.mxu0
    %v547 = vadd.f32 %v474, %v525
    %v548 = vadd.f32 %v475, %v545
    %549 = vst [vmem:[#allocation1] ss:$2 sm:$0xff] %v66
    %v550 = vld.sshfl [vmem:[#allocation1] sm:$0xff pattern:$0x75316420]
    %v551 = vld.sshfl [vmem:[#allocation1 + $0x8] sm:$0xff pattern:$0x75316420]
    %554 = vrot.lane.b32.xlu0 %v550, 112
    %v555 = vpop.permute.xlu0 %554
    %556 = vrot.lane.b32.xlu0 %v551, 112
    %v557 = vpop.permute.xlu0 %556
    %vm558 = vcmp.lt.s32.totalorder %v22, 112
    %v559 = vsel %vm558, %v555, %v557
    %v560 = vsel %vm558, %v557, %v555
    %v561 = vsel %vm60, 1, 0
    %v562 = vsel %vm61, 1, 0
    %vm563 = vcmp.eq.s32.totalorder %v561, 1
    %vm564 = vcmp.eq.s32.totalorder %v562, 1
    %v565 = vsel %vm563, %v559, 0.0
    %v566 = vsel %vm564, %v560, 0.0
    %s567 = scalar_lea.vmem %s1, 28
    %v568 = vld [vmem:[%s567] sm:$0xf]
    %v570 = vsel %vm109, %v568, 0
    %v573 = vsel %vm113, %v565, 0
    %v576 = vsel %vm113, %v566, 0
    %578 = vmatpush.msra.mxu0 0.0
    %579 = vmatpush.msra.mxu0 0.0
    %580 = vmatpush.msra.mxu0 0.0
    %581 = vmatpush.msra.mxu0 0.0
    %582 = vmatpush.msra.mxu0 0.0
    %583 = vmatpush.msra.mxu0 0.0
    %584 = vmatpush.msra.mxu0 0.0
    %585 = vmatpush.msra.mxu0 0.0
    %586 = vmatpush.msra.mxu0 0.0
    %587 = vmatpush.msra.mxu0 0.0
    %588 = vmatpush.msra.mxu0 0.0
    %589 = vmatpush.msra.mxu0 0.0
    %590 = vmatpush.msra.mxu0 0.0
    %591 = vmatpush.msra.mxu0 0.0
    %592 = vmatpush.msra.mxu0 0.0
    %593 = vmatpush.msra.mxu0 %v573
    %594 = vmatmul.f32.gmra.mxu0 %v570
    %v595 = vpop.f32.mrf.mxu0
    %v596 = vadd.f32 0.0, %v595
    %597 = vdwg.mxu0
    %598 = vmatpush.msra.mxu0 0.0
    %599 = vmatpush.msra.mxu0 0.0
    %600 = vmatpush.msra.mxu0 0.0
    %601 = vmatpush.msra.mxu0 0.0
    %602 = vmatpush.msra.mxu0 0.0
    %603 = vmatpush.msra.mxu0 0.0
    %604 = vmatpush.msra.mxu0 0.0
    %605 = vmatpush.msra.mxu0 0.0
    %606 = vmatpush.msra.mxu0 0.0
    %607 = vmatpush.msra.mxu0 0.0
    %608 = vmatpush.msra.mxu0 0.0
    %609 = vmatpush.msra.mxu0 0.0
    %610 = vmatpush.msra.mxu0 0.0
    %611 = vmatpush.msra.mxu0 0.0
    %612 = vmatpush.msra.mxu0 0.0
    %613 = vmatpush.msra.mxu0 %v576
    %614 = vmatmul.f32.gmra.mxu0 %v570
    %v615 = vpop.f32.mrf.mxu0
    %v616 = vadd.f32 0.0, %v615
    %617 = vdwg.mxu0
    %v618 = vadd.f32 %v547, %v596
    %v619 = vadd.f32 %v548, %v616
    %620 = vst [vmem:[#allocation1] ss:$2 sm:$0xff] %v66
    %v621 = vld.sshfl [vmem:[#allocation1] sm:$0xff pattern:$0x75316420]
    %v622 = vld.sshfl [vmem:[#allocation1 + $0x8] sm:$0xff pattern:$0x75316420]
    %625 = vrot.lane.b32.xlu0 %v621, 111
    %v626 = vpop.permute.xlu0 %625
    %627 = vrot.lane.b32.xlu0 %v622, 111
    %v628 = vpop.permute.xlu0 %627
    %vm629 = vcmp.lt.s32.totalorder %v22, 111
    %v630 = vsel %vm629, %v626, %v628
    %v631 = vsel %vm629, %v628, %v626
    %v632 = vsel %vm64, 1, 0
    %v633 = vsel %vm65, 1, 0
    %v634 = vperm.slane %v632, 0
    %v635 = vperm.slane %v633, 0
    %vm636 = vcmp.eq.s32.totalorder %v634, 1
    %vm637 = vcmp.eq.s32.totalorder %v635, 1
    %v638 = vsel %vm636, %v630, 0.0
    %v639 = vsel %vm637, %v631, 0.0
    %s640 = scalar_lea.vmem %s1, 32
    %v641 = vld [vmem:[%s640] sm:$0xf]
    %v643 = vsel %vm109, %v641, 0
    %v646 = vsel %vm113, %v638, 0
    %v649 = vsel %vm113, %v639, 0
    %651 = vmatpush.msra.mxu0 0.0
    %652 = vmatpush.msra.mxu0 0.0
    %653 = vmatpush.msra.mxu0 0.0
    %654 = vmatpush.msra.mxu0 0.0
    %655 = vmatpush.msra.mxu0 0.0
    %656 = vmatpush.msra.mxu0 0.0
    %657 = vmatpush.msra.mxu0 0.0
    %658 = vmatpush.msra.mxu0 0.0
    %659 = vmatpush.msra.mxu0 0.0
    %660 = vmatpush.msra.mxu0 0.0
    %661 = vmatpush.msra.mxu0 0.0
    %662 = vmatpush.msra.mxu0 0.0
    %663 = vmatpush.msra.mxu0 0.0
    %664 = vmatpush.msra.mxu0 0.0
    %665 = vmatpush.msra.mxu0 0.0
    %666 = vmatpush.msra.mxu0 %v646
    %667 = vmatmul.f32.gmra.mxu0 %v643
    %v668 = vpop.f32.mrf.mxu0
    %v669 = vadd.f32 0.0, %v668
    %670 = vdwg.mxu0
    %671 = vmatpush.msra.mxu0 0.0
    %672 = vmatpush.msra.mxu0 0.0
    %673 = vmatpush.msra.mxu0 0.0
    %674 = vmatpush.msra.mxu0 0.0
    %675 = vmatpush.msra.mxu0 0.0
    %676 = vmatpush.msra.mxu0 0.0
    %677 = vmatpush.msra.mxu0 0.0
    %678 = vmatpush.msra.mxu0 0.0
    %679 = vmatpush.msra.mxu0 0.0
    %680 = vmatpush.msra.mxu0 0.0
    %681 = vmatpush.msra.mxu0 0.0
    %682 = vmatpush.msra.mxu0 0.0
    %683 = vmatpush.msra.mxu0 0.0
    %684 = vmatpush.msra.mxu0 0.0
    %685 = vmatpush.msra.mxu0 0.0
    %686 = vmatpush.msra.mxu0 %v649
    %687 = vmatmul.f32.gmra.mxu0 %v643
    %v688 = vpop.f32.mrf.mxu0
    %v689 = vadd.f32 0.0, %v688
    %690 = vdwg.mxu0
    %v691 = vadd.f32 %v618, %v669
    %v692 = vadd.f32 %v619, %v689
    %v693 = vld [vmem:[%s2] sm:$0xf]
    %695 = vset.pattern.permute.xlu0 0
    %696 = vperm.xlu0 %695, %v693
    %v697 = vpop.permute.xlu0 %696
    %v699 = vadd.f32 %v691, %v697
    %v700 = vadd.f32 %v692, %v697
    %v701 = vmax.f32 %v699, 0.0
    %v702 = vmax.f32 %v700, 0.0
    %703 = vrot.lane.b32.xlu0 %v701, 17
    %v704 = vpop.permute.xlu0 %703
    %705 = vrot.lane.b32.xlu0 %v702, 17
    %v706 = vpop.permute.xlu0 %705
    %v707 = vsel %vm77, %v704, %v706
    %v708 = vsel %vm77, %v706, %v704
    %v709 = vsel %vm84, %v708, 0.0
    %v710 = vsel %vm85, %v707, 0.0
    %v711 = vld [vmem:[%s3] sm:$0xf]
    %712 = vrot.lane.b32.xlu0 %v701, 16
    %v713 = vpop.permute.xlu0 %712
    %714 = vrot.lane.b32.xlu0 %v702, 16
    %v715 = vpop.permute.xlu0 %714
    %v716 = vsel %vm98, %v713, %v715
    %v717 = vsel %vm98, %v715, %v713
    %v718 = vsel %vm103, %v717, 0.0
    %v719 = vsel %vm104, %v716, 0.0
    %s720 = scalar_lea.vmem %s3, 4
    %v721 = vld [vmem:[%s720] sm:$0xf]
    %v723 = vsel %vm109, %v721, 0
    %v726 = vsel %vm113, %v718, 0
    %v729 = vsel %vm113, %v719, 0
    %731 = vmatpush.msra.mxu0 0.0
    %732 = vmatpush.msra.mxu0 0.0
    %733 = vmatpush.msra.mxu0 0.0
    %734 = vmatpush.msra.mxu0 0.0
    %735 = vmatpush.msra.mxu0 0.0
    %736 = vmatpush.msra.mxu0 0.0
    %737 = vmatpush.msra.mxu0 0.0
    %738 = vmatpush.msra.mxu0 0.0
    %739 = vmatpush.msra.mxu0 0.0
    %740 = vmatpush.msra.mxu0 0.0
    %741 = vmatpush.msra.mxu0 0.0
    %742 = vmatpush.msra.mxu0 0.0
    %743 = vmatpush.msra.mxu0 0.0
    %744 = vmatpush.msra.mxu0 0.0
    %745 = vmatpush.msra.mxu0 0.0
    %746 = vmatpush.msra.mxu0 %v726
    %747 = vmatmul.f32.gmra.mxu0 %v723
    %v748 = vpop.f32.mrf.mxu0
    %v749 = vadd.f32 0.0, %v748
    %750 = vdwg.mxu0
    %751 = vmatpush.msra.mxu0 0.0
    %752 = vmatpush.msra.mxu0 0.0
    %753 = vmatpush.msra.mxu0 0.0
    %754 = vmatpush.msra.mxu0 0.0
    %755 = vmatpush.msra.mxu0 0.0
    %756 = vmatpush.msra.mxu0 0.0
    %757 = vmatpush.msra.mxu0 0.0
    %758 = vmatpush.msra.mxu0 0.0
    %759 = vmatpush.msra.mxu0 0.0
    %760 = vmatpush.msra.mxu0 0.0
    %761 = vmatpush.msra.mxu0 0.0
    %762 = vmatpush.msra.mxu0 0.0
    %763 = vmatpush.msra.mxu0 0.0
    %764 = vmatpush.msra.mxu0 0.0
    %765 = vmatpush.msra.mxu0 0.0
    %766 = vmatpush.msra.mxu0 %v729
    %767 = vmatmul.f32.gmra.mxu0 %v723
    %v768 = vpop.f32.mrf.mxu0
    %v769 = vadd.f32 0.0, %v768
    %770 = vdwg.mxu0
    %v772 = vsel %vm109, %v711, 0
    %v775 = vsel %vm113, %v709, 0
    %v778 = vsel %vm113, %v710, 0
    %780 = vmatpush.msra.mxu0 0.0
    %781 = vmatpush.msra.mxu0 0.0
    %782 = vmatpush.msra.mxu0 0.0
    %783 = vmatpush.msra.mxu0 0.0
    %784 = vmatpush.msra.mxu0 0.0
    %785 = vmatpush.msra.mxu0 0.0
    %786 = vmatpush.msra.mxu0 0.0
    %787 = vmatpush.msra.mxu0 0.0
    %788 = vmatpush.msra.mxu0 0.0
    %789 = vmatpush.msra.mxu0 0.0
    %790 = vmatpush.msra.mxu0 0.0
    %791 = vmatpush.msra.mxu0 0.0
    %792 = vmatpush.msra.mxu0 0.0
    %793 = vmatpush.msra.mxu0 0.0
    %794 = vmatpush.msra.mxu0 0.0
    %795 = vmatpush.msra.mxu0 %v775
    %796 = vmatmul.f32.gmra.mxu0 %v772
    %v797 = vpop.f32.mrf.mxu0
    %v798 = vadd.f32 %v749, %v797
    %799 = vdwg.mxu0
    %800 = vmatpush.msra.mxu0 0.0
    %801 = vmatpush.msra.mxu0 0.0
    %802 = vmatpush.msra.mxu0 0.0
    %803 = vmatpush.msra.mxu0 0.0
    %804 = vmatpush.msra.mxu0 0.0
    %805 = vmatpush.msra.mxu0 0.0
    %806 = vmatpush.msra.mxu0 0.0
    %807 = vmatpush.msra.mxu0 0.0
    %808 = vmatpush.msra.mxu0 0.0
    %809 = vmatpush.msra.mxu0 0.0
    %810 = vmatpush.msra.mxu0 0.0
    %811 = vmatpush.msra.mxu0 0.0
    %812 = vmatpush.msra.mxu0 0.0
    %813 = vmatpush.msra.mxu0 0.0
    %814 = vmatpush.msra.mxu0 0.0
    %815 = vmatpush.msra.mxu0 %v778
    %816 = vmatmul.f32.gmra.mxu0 %v772
    %v817 = vpop.f32.mrf.mxu0
    %v818 = vadd.f32 %v769, %v817
    %819 = vdwg.mxu0
    %820 = vrot.lane.b32.xlu0 %v701, 15
    %v821 = vpop.permute.xlu0 %820
    %822 = vrot.lane.b32.xlu0 %v702, 15
    %v823 = vpop.permute.xlu0 %822
    %v824 = vsel %vm218, %v821, %v823
    %v825 = vsel %vm218, %v823, %v821
    %v826 = vsel %vm225, %v825, 0.0
    %v827 = vsel %vm226, %v824, 0.0
    %s828 = scalar_lea.vmem %s3, 8
    %v829 = vld [vmem:[%s828] sm:$0xf]
    %v831 = vsel %vm109, %v829, 0
    %v834 = vsel %vm113, %v826, 0
    %v837 = vsel %vm113, %v827, 0
    %839 = vmatpush.msra.mxu0 0.0
    %840 = vmatpush.msra.mxu0 0.0
    %841 = vmatpush.msra.mxu0 0.0
    %842 = vmatpush.msra.mxu0 0.0
    %843 = vmatpush.msra.mxu0 0.0
    %844 = vmatpush.msra.mxu0 0.0
    %845 = vmatpush.msra.mxu0 0.0
    %846 = vmatpush.msra.mxu0 0.0
    %847 = vmatpush.msra.mxu0 0.0
    %848 = vmatpush.msra.mxu0 0.0
    %849 = vmatpush.msra.mxu0 0.0
    %850 = vmatpush.msra.mxu0 0.0
    %851 = vmatpush.msra.mxu0 0.0
    %852 = vmatpush.msra.mxu0 0.0
    %853 = vmatpush.msra.mxu0 0.0
    %854 = vmatpush.msra.mxu0 %v834
    %855 = vmatmul.f32.gmra.mxu0 %v831
    %v856 = vpop.f32.mrf.mxu0
    %v857 = vadd.f32 0.0, %v856
    %858 = vdwg.mxu0
    %859 = vmatpush.msra.mxu0 0.0
    %860 = vmatpush.msra.mxu0 0.0
    %861 = vmatpush.msra.mxu0 0.0
    %862 = vmatpush.msra.mxu0 0.0
    %863 = vmatpush.msra.mxu0 0.0
    %864 = vmatpush.msra.mxu0 0.0
    %865 = vmatpush.msra.mxu0 0.0
    %866 = vmatpush.msra.mxu0 0.0
    %867 = vmatpush.msra.mxu0 0.0
    %868 = vmatpush.msra.mxu0 0.0
    %869 = vmatpush.msra.mxu0 0.0
    %870 = vmatpush.msra.mxu0 0.0
    %871 = vmatpush.msra.mxu0 0.0
    %872 = vmatpush.msra.mxu0 0.0
    %873 = vmatpush.msra.mxu0 0.0
    %874 = vmatpush.msra.mxu0 %v837
    %875 = vmatmul.f32.gmra.mxu0 %v831
    %v876 = vpop.f32.mrf.mxu0
    %v877 = vadd.f32 0.0, %v876
    %878 = vdwg.mxu0
    %v879 = vadd.f32 %v798, %v857
    %v880 = vadd.f32 %v818, %v877
    %881 = vrot.lane.b32.xlu0 %v701, 1
    %v882 = vpop.permute.xlu0 %881
    %883 = vrot.lane.b32.xlu0 %v702, 1
    %v884 = vpop.permute.xlu0 %883
    %v885 = vsel %vm291, %v882, %v884
    %v886 = vsel %vm291, %v884, %v882
    %v887 = vsel %vm296, %v886, 0.0
    %v888 = vsel %vm296, %v885, 0.0
    %s889 = scalar_lea.vmem %s3, 12
    %v890 = vld [vmem:[%s889] sm:$0xf]
    %v892 = vsel %vm109, %v890, 0
    %v895 = vsel %vm113, %v887, 0
    %v898 = vsel %vm113, %v888, 0
    %900 = vmatpush.msra.mxu0 0.0
    %901 = vmatpush.msra.mxu0 0.0
    %902 = vmatpush.msra.mxu0 0.0
    %903 = vmatpush.msra.mxu0 0.0
    %904 = vmatpush.msra.mxu0 0.0
    %905 = vmatpush.msra.mxu0 0.0
    %906 = vmatpush.msra.mxu0 0.0
    %907 = vmatpush.msra.mxu0 0.0
    %908 = vmatpush.msra.mxu0 0.0
    %909 = vmatpush.msra.mxu0 0.0
    %910 = vmatpush.msra.mxu0 0.0
    %911 = vmatpush.msra.mxu0 0.0
    %912 = vmatpush.msra.mxu0 0.0
    %913 = vmatpush.msra.mxu0 0.0
    %914 = vmatpush.msra.mxu0 0.0
    %915 = vmatpush.msra.mxu0 %v895
    %916 = vmatmul.f32.gmra.mxu0 %v892
    %v917 = vpop.f32.mrf.mxu0
    %v918 = vadd.f32 0.0, %v917
    %919 = vdwg.mxu0
    %920 = vmatpush.msra.mxu0 0.0
    %921 = vmatpush.msra.mxu0 0.0
    %922 = vmatpush.msra.mxu0 0.0
    %923 = vmatpush.msra.mxu0 0.0
    %924 = vmatpush.msra.mxu0 0.0
    %925 = vmatpush.msra.mxu0 0.0
    %926 = vmatpush.msra.mxu0 0.0
    %927 = vmatpush.msra.mxu0 0.0
    %928 = vmatpush.msra.mxu0 0.0
    %929 = vmatpush.msra.mxu0 0.0
    %930 = vmatpush.msra.mxu0 0.0
    %931 = vmatpush.msra.mxu0 0.0
    %932 = vmatpush.msra.mxu0 0.0
    %933 = vmatpush.msra.mxu0 0.0
    %934 = vmatpush.msra.mxu0 0.0
    %935 = vmatpush.msra.mxu0 %v898
    %936 = vmatmul.f32.gmra.mxu0 %v892
    %v937 = vpop.f32.mrf.mxu0
    %v938 = vadd.f32 0.0, %v937
    %939 = vdwg.mxu0
    %v940 = vadd.f32 %v879, %v918
    %v941 = vadd.f32 %v880, %v938
    %s942 = scalar_lea.vmem %s3, 16
    %v943 = vld [vmem:[%s942] sm:$0xf]
    %v945 = vsel %vm109, %v943, 0
    %v948 = vsel %vm113, %v701, 0
    %v951 = vsel %vm113, %v702, 0
    %953 = vmatpush.msra.mxu0 0.0
    %954 = vmatpush.msra.mxu0 0.0
    %955 = vmatpush.msra.mxu0 0.0
    %956 = vmatpush.msra.mxu0 0.0
    %957 = vmatpush.msra.mxu0 0.0
    %958 = vmatpush.msra.mxu0 0.0
    %959 = vmatpush.msra.mxu0 0.0
    %960 = vmatpush.msra.mxu0 0.0
    %961 = vmatpush.msra.mxu0 0.0
    %962 = vmatpush.msra.mxu0 0.0
    %963 = vmatpush.msra.mxu0 0.0
    %964 = vmatpush.msra.mxu0 0.0
    %965 = vmatpush.msra.mxu0 0.0
    %966 = vmatpush.msra.mxu0 0.0
    %967 = vmatpush.msra.mxu0 0.0
    %968 = vmatpush.msra.mxu0 %v948
    %969 = vmatmul.f32.gmra.mxu0 %v945
    %v970 = vpop.f32.mrf.mxu0
    %v971 = vadd.f32 0.0, %v970
    %972 = vdwg.mxu0
    %973 = vmatpush.msra.mxu0 0.0
    %974 = vmatpush.msra.mxu0 0.0
    %975 = vmatpush.msra.mxu0 0.0
    %976 = vmatpush.msra.mxu0 0.0
    %977 = vmatpush.msra.mxu0 0.0
    %978 = vmatpush.msra.mxu0 0.0
    %979 = vmatpush.msra.mxu0 0.0
    %980 = vmatpush.msra.mxu0 0.0
    %981 = vmatpush.msra.mxu0 0.0
    %982 = vmatpush.msra.mxu0 0.0
    %983 = vmatpush.msra.mxu0 0.0
    %984 = vmatpush.msra.mxu0 0.0
    %985 = vmatpush.msra.mxu0 0.0
    %986 = vmatpush.msra.mxu0 0.0
    %987 = vmatpush.msra.mxu0 0.0
    %988 = vmatpush.msra.mxu0 %v951
    %989 = vmatmul.f32.gmra.mxu0 %v945
    %v990 = vpop.f32.mrf.mxu0
    %v991 = vadd.f32 0.0, %v990
    %992 = vdwg.mxu0
    %v993 = vadd.f32 %v940, %v971
    %v994 = vadd.f32 %v941, %v991
    %995 = vrot.lane.b32.xlu0 %v701, 127
    %v996 = vpop.permute.xlu0 %995
    %997 = vrot.lane.b32.xlu0 %v702, 127
    %v998 = vpop.permute.xlu0 %997
    %v999 = vsel %vm415, %v996, %v998
    %v1000 = vsel %vm415, %v998, %v996
    %v1001 = vsel %vm420, %v999, 0.0
    %v1002 = vsel %vm420, %v1000, 0.0
    %s1003 = scalar_lea.vmem %s3, 20
    %v1004 = vld [vmem:[%s1003] sm:$0xf]
    %v1006 = vsel %vm109, %v1004, 0
    %v1009 = vsel %vm113, %v1001, 0
    %v1012 = vsel %vm113, %v1002, 0
    %1014 = vmatpush.msra.mxu0 0.0
    %1015 = vmatpush.msra.mxu0 0.0
    %1016 = vmatpush.msra.mxu0 0.0
    %1017 = vmatpush.msra.mxu0 0.0
    %1018 = vmatpush.msra.mxu0 0.0
    %1019 = vmatpush.msra.mxu0 0.0
    %1020 = vmatpush.msra.mxu0 0.0
    %1021 = vmatpush.msra.mxu0 0.0
    %1022 = vmatpush.msra.mxu0 0.0
    %1023 = vmatpush.msra.mxu0 0.0
    %1024 = vmatpush.msra.mxu0 0.0
    %1025 = vmatpush.msra.mxu0 0.0
    %1026 = vmatpush.msra.mxu0 0.0
    %1027 = vmatpush.msra.mxu0 0.0
    %1028 = vmatpush.msra.mxu0 0.0
    %1029 = vmatpush.msra.mxu0 %v1009
    %1030 = vmatmul.f32.gmra.mxu0 %v1006
    %v1031 = vpop.f32.mrf.mxu0
    %v1032 = vadd.f32 0.0, %v1031
    %1033 = vdwg.mxu0
    %1034 = vmatpush.msra.mxu0 0.0
    %1035 = vmatpush.msra.mxu0 0.0
    %1036 = vmatpush.msra.mxu0 0.0
    %1037 = vmatpush.msra.mxu0 0.0
    %1038 = vmatpush.msra.mxu0 0.0
    %1039 = vmatpush.msra.mxu0 0.0
    %1040 = vmatpush.msra.mxu0 0.0
    %1041 = vmatpush.msra.mxu0 0.0
    %1042 = vmatpush.msra.mxu0 0.0
    %1043 = vmatpush.msra.mxu0 0.0
    %1044 = vmatpush.msra.mxu0 0.0
    %1045 = vmatpush.msra.mxu0 0.0
    %1046 = vmatpush.msra.mxu0 0.0
    %1047 = vmatpush.msra.mxu0 0.0
    %1048 = vmatpush.msra.mxu0 0.0
    %1049 = vmatpush.msra.mxu0 %v1012
    %1050 = vmatmul.f32.gmra.mxu0 %v1006
    %v1051 = vpop.f32.mrf.mxu0
    %v1052 = vadd.f32 0.0, %v1051
    %1053 = vdwg.mxu0
    %v1054 = vadd.f32 %v993, %v1032
    %v1055 = vadd.f32 %v994, %v1052
    %1056 = vrot.lane.b32.xlu0 %v701, 113
    %v1057 = vpop.permute.xlu0 %1056
    %1058 = vrot.lane.b32.xlu0 %v702, 113
    %v1059 = vpop.permute.xlu0 %1058
    %v1060 = vsel %vm485, %v1057, %v1059
    %v1061 = vsel %vm485, %v1059, %v1057
    %v1062 = vsel %vm492, %v1060, 0.0
    %v1063 = vsel %vm493, %v1061, 0.0
    %s1064 = scalar_lea.vmem %s3, 24
    %v1065 = vld [vmem:[%s1064] sm:$0xf]
    %v1067 = vsel %vm109, %v1065, 0
    %v1070 = vsel %vm113, %v1062, 0
    %v1073 = vsel %vm113, %v1063, 0
    %1075 = vmatpush.msra.mxu0 0.0
    %1076 = vmatpush.msra.mxu0 0.0
    %1077 = vmatpush.msra.mxu0 0.0
    %1078 = vmatpush.msra.mxu0 0.0
    %1079 = vmatpush.msra.mxu0 0.0
    %1080 = vmatpush.msra.mxu0 0.0
    %1081 = vmatpush.msra.mxu0 0.0
    %1082 = vmatpush.msra.mxu0 0.0
    %1083 = vmatpush.msra.mxu0 0.0
    %1084 = vmatpush.msra.mxu0 0.0
    %1085 = vmatpush.msra.mxu0 0.0
    %1086 = vmatpush.msra.mxu0 0.0
    %1087 = vmatpush.msra.mxu0 0.0
    %1088 = vmatpush.msra.mxu0 0.0
    %1089 = vmatpush.msra.mxu0 0.0
    %1090 = vmatpush.msra.mxu0 %v1070
    %1091 = vmatmul.f32.gmra.mxu0 %v1067
    %v1092 = vpop.f32.mrf.mxu0
    %v1093 = vadd.f32 0.0, %v1092
    %1094 = vdwg.mxu0
    %1095 = vmatpush.msra.mxu0 0.0
    %1096 = vmatpush.msra.mxu0 0.0
    %1097 = vmatpush.msra.mxu0 0.0
    %1098 = vmatpush.msra.mxu0 0.0
    %1099 = vmatpush.msra.mxu0 0.0
    %1100 = vmatpush.msra.mxu0 0.0
    %1101 = vmatpush.msra.mxu0 0.0
    %1102 = vmatpush.msra.mxu0 0.0
    %1103 = vmatpush.msra.mxu0 0.0
    %1104 = vmatpush.msra.mxu0 0.0
    %1105 = vmatpush.msra.mxu0 0.0
    %1106 = vmatpush.msra.mxu0 0.0
    %1107 = vmatpush.msra.mxu0 0.0
    %1108 = vmatpush.msra.mxu0 0.0
    %1109 = vmatpush.msra.mxu0 0.0
    %1110 = vmatpush.msra.mxu0 %v1073
    %1111 = vmatmul.f32.gmra.mxu0 %v1067
    %v1112 = vpop.f32.mrf.mxu0
    %v1113 = vadd.f32 0.0, %v1112
    %1114 = vdwg.mxu0
    %v1115 = vadd.f32 %v1054, %v1093
    %v1116 = vadd.f32 %v1055, %v1113
    %1117 = vrot.lane.b32.xlu0 %v701, 112
    %v1118 = vpop.permute.xlu0 %1117
    %1119 = vrot.lane.b32.xlu0 %v702, 112
    %v1120 = vpop.permute.xlu0 %1119
    %v1121 = vsel %vm558, %v1118, %v1120
    %v1122 = vsel %vm558, %v1120, %v1118
    %v1123 = vsel %vm563, %v1121, 0.0
    %v1124 = vsel %vm564, %v1122, 0.0
    %s1125 = scalar_lea.vmem %s3, 28
    %v1126 = vld [vmem:[%s1125] sm:$0xf]
    %v1128 = vsel %vm109, %v1126, 0
    %v1131 = vsel %vm113, %v1123, 0
    %v1134 = vsel %vm113, %v1124, 0
    %1136 = vmatpush.msra.mxu0 0.0
    %1137 = vmatpush.msra.mxu0 0.0
    %1138 = vmatpush.msra.mxu0 0.0
    %1139 = vmatpush.msra.mxu0 0.0
    %1140 = vmatpush.msra.mxu0 0.0
    %1141 = vmatpush.msra.mxu0 0.0
    %1142 = vmatpush.msra.mxu0 0.0
    %1143 = vmatpush.msra.mxu0 0.0
    %1144 = vmatpush.msra.mxu0 0.0
    %1145 = vmatpush.msra.mxu0 0.0
    %1146 = vmatpush.msra.mxu0 0.0
    %1147 = vmatpush.msra.mxu0 0.0
    %1148 = vmatpush.msra.mxu0 0.0
    %1149 = vmatpush.msra.mxu0 0.0
    %1150 = vmatpush.msra.mxu0 0.0
    %1151 = vmatpush.msra.mxu0 %v1131
    %1152 = vmatmul.f32.gmra.mxu0 %v1128
    %v1153 = vpop.f32.mrf.mxu0
    %v1154 = vadd.f32 0.0, %v1153
    %1155 = vdwg.mxu0
    %1156 = vmatpush.msra.mxu0 0.0
    %1157 = vmatpush.msra.mxu0 0.0
    %1158 = vmatpush.msra.mxu0 0.0
    %1159 = vmatpush.msra.mxu0 0.0
    %1160 = vmatpush.msra.mxu0 0.0
    %1161 = vmatpush.msra.mxu0 0.0
    %1162 = vmatpush.msra.mxu0 0.0
    %1163 = vmatpush.msra.mxu0 0.0
    %1164 = vmatpush.msra.mxu0 0.0
    %1165 = vmatpush.msra.mxu0 0.0
    %1166 = vmatpush.msra.mxu0 0.0
    %1167 = vmatpush.msra.mxu0 0.0
    %1168 = vmatpush.msra.mxu0 0.0
    %1169 = vmatpush.msra.mxu0 0.0
    %1170 = vmatpush.msra.mxu0 0.0
    %1171 = vmatpush.msra.mxu0 %v1134
    %1172 = vmatmul.f32.gmra.mxu0 %v1128
    %v1173 = vpop.f32.mrf.mxu0
    %v1174 = vadd.f32 0.0, %v1173
    %1175 = vdwg.mxu0
    %v1176 = vadd.f32 %v1115, %v1154
    %v1177 = vadd.f32 %v1116, %v1174
    %1178 = vrot.lane.b32.xlu0 %v701, 111
    %v1179 = vpop.permute.xlu0 %1178
    %1180 = vrot.lane.b32.xlu0 %v702, 111
    %v1181 = vpop.permute.xlu0 %1180
    %v1182 = vsel %vm629, %v1179, %v1181
    %v1183 = vsel %vm629, %v1181, %v1179
    %v1184 = vsel %vm636, %v1182, 0.0
    %v1185 = vsel %vm637, %v1183, 0.0
    %s1186 = scalar_lea.vmem %s3, 32
    %v1187 = vld [vmem:[%s1186] sm:$0xf]
    %v1189 = vsel %vm109, %v1187, 0
    %v1192 = vsel %vm113, %v1184, 0
    %v1195 = vsel %vm113, %v1185, 0
    %1197 = vmatpush.msra.mxu0 0.0
    %1198 = vmatpush.msra.mxu0 0.0
    %1199 = vmatpush.msra.mxu0 0.0
    %1200 = vmatpush.msra.mxu0 0.0
    %1201 = vmatpush.msra.mxu0 0.0
    %1202 = vmatpush.msra.mxu0 0.0
    %1203 = vmatpush.msra.mxu0 0.0
    %1204 = vmatpush.msra.mxu0 0.0
    %1205 = vmatpush.msra.mxu0 0.0
    %1206 = vmatpush.msra.mxu0 0.0
    %1207 = vmatpush.msra.mxu0 0.0
    %1208 = vmatpush.msra.mxu0 0.0
    %1209 = vmatpush.msra.mxu0 0.0
    %1210 = vmatpush.msra.mxu0 0.0
    %1211 = vmatpush.msra.mxu0 0.0
    %1212 = vmatpush.msra.mxu0 %v1192
    %1213 = vmatmul.f32.gmra.mxu0 %v1189
    %v1214 = vpop.f32.mrf.mxu0
    %v1215 = vadd.f32 0.0, %v1214
    %1216 = vdwg.mxu0
    %1217 = vmatpush.msra.mxu0 0.0
    %1218 = vmatpush.msra.mxu0 0.0
    %1219 = vmatpush.msra.mxu0 0.0
    %1220 = vmatpush.msra.mxu0 0.0
    %1221 = vmatpush.msra.mxu0 0.0
    %1222 = vmatpush.msra.mxu0 0.0
    %1223 = vmatpush.msra.mxu0 0.0
    %1224 = vmatpush.msra.mxu0 0.0
    %1225 = vmatpush.msra.mxu0 0.0
    %1226 = vmatpush.msra.mxu0 0.0
    %1227 = vmatpush.msra.mxu0 0.0
    %1228 = vmatpush.msra.mxu0 0.0
    %1229 = vmatpush.msra.mxu0 0.0
    %1230 = vmatpush.msra.mxu0 0.0
    %1231 = vmatpush.msra.mxu0 0.0
    %1232 = vmatpush.msra.mxu0 %v1195
    %1233 = vmatmul.f32.gmra.mxu0 %v1189
    %v1234 = vpop.f32.mrf.mxu0
    %v1235 = vadd.f32 0.0, %v1234
    %1236 = vdwg.mxu0
    %v1237 = vadd.f32 %v1176, %v1215
    %v1238 = vadd.f32 %v1177, %v1235
    %v1239 = vld [vmem:[%s4] sm:$0xf]
    %1241 = vset.pattern.permute.xlu0 0
    %1242 = vperm.xlu0 %1241, %v1239
    %v1243 = vpop.permute.xlu0 %1242
    %v1245 = vadd.f32 %v1237, %v1243
    %v1246 = vadd.f32 %v1238, %v1243
    %v1247 = vmax.f32 %v1245, 0.0
    %v1248 = vmax.f32 %v1246, 0.0
    %1249 = vst [vmem:[#allocation1] ss:$2 sm:$0xff] %v66
    %v1250 = vld.sshfl [vmem:[#allocation1] sm:$0xff pattern:$0x75316420]
    %v1251 = vld.sshfl [vmem:[#allocation1 + $0x8] sm:$0xff pattern:$0x75316420]
    %v1254 = vadd.f32 %v1247, %v1250
    %v1255 = vadd.f32 %v1248, %v1251
    %v1258 = vrot.slane %v1255, 4
    %v1259 = vsel %vm113, %v1254, %v1258
    %1261 = vst [vmem:[#allocation2] sm:$0xff] %v1259
    %s1262 = scalar_lea.vmem %s0, 8
    %v1263 = vld [vmem:[%s1262] sm:$0xff]
    %1265 = vst [vmem:[#allocation1] ss:$2 sm:$0xff] %v1263
    %v1266 = vld.sshfl [vmem:[#allocation1] sm:$0xff pattern:$0x75316420]
    %v1267 = vld.sshfl [vmem:[#allocation1 + $0x8] sm:$0xff pattern:$0x75316420]
    %1270 = vrot.lane.b32.xlu0 %v1266, 17
    %v1271 = vpop.permute.xlu0 %1270
    %1272 = vrot.lane.b32.xlu0 %v1267, 17
    %v1273 = vpop.permute.xlu0 %1272
    %v1274 = vsel %vm77, %v1271, %v1273
    %v1275 = vsel %vm77, %v1273, %v1271
    %v1276 = vsel %vm84, %v1275, 0.0
    %v1277 = vsel %vm85, %v1274, 0.0
    %v1278 = vld [vmem:[%s1] sm:$0xf]
    %1279 = vst [vmem:[#allocation1] ss:$2 sm:$0xff] %v1263
    %v1280 = vld.sshfl [vmem:[#allocation1] sm:$0xff pattern:$0x75316420]
    %v1281 = vld.sshfl [vmem:[#allocation1 + $0x8] sm:$0xff pattern:$0x75316420]
    %1284 = vrot.lane.b32.xlu0 %v1280, 16
    %v1285 = vpop.permute.xlu0 %1284
    %1286 = vrot.lane.b32.xlu0 %v1281, 16
    %v1287 = vpop.permute.xlu0 %1286
    %v1288 = vsel %vm98, %v1285, %v1287
    %v1289 = vsel %vm98, %v1287, %v1285
    %v1290 = vsel %vm103, %v1289, 0.0
    %v1291 = vsel %vm104, %v1288, 0.0
    %v1292 = vld [vmem:[%s107] sm:$0xf]
    %v1294 = vsel %vm109, %v1292, 0
    %v1297 = vsel %vm113, %v1290, 0
    %v1300 = vsel %vm113, %v1291, 0
    %1302 = vmatpush.msra.mxu0 0.0
    %1303 = vmatpush.msra.mxu0 0.0
    %1304 = vmatpush.msra.mxu0 0.0
    %1305 = vmatpush.msra.mxu0 0.0
    %1306 = vmatpush.msra.mxu0 0.0
    %1307 = vmatpush.msra.mxu0 0.0
    %1308 = vmatpush.msra.mxu0 0.0
    %1309 = vmatpush.msra.mxu0 0.0
    %1310 = vmatpush.msra.mxu0 0.0
    %1311 = vmatpush.msra.mxu0 0.0
    %1312 = vmatpush.msra.mxu0 0.0
    %1313 = vmatpush.msra.mxu0 0.0
    %1314 = vmatpush.msra.mxu0 0.0
    %1315 = vmatpush.msra.mxu0 0.0
    %1316 = vmatpush.msra.mxu0 0.0
    %1317 = vmatpush.msra.mxu0 %v1297
    %1318 = vmatmul.f32.gmra.mxu0 %v1294
    %v1319 = vpop.f32.mrf.mxu0
    %v1320 = vadd.f32 0.0, %v1319
    %1321 = vdwg.mxu0
    %1322 = vmatpush.msra.mxu0 0.0
    %1323 = vmatpush.msra.mxu0 0.0
    %1324 = vmatpush.msra.mxu0 0.0
    %1325 = vmatpush.msra.mxu0 0.0
    %1326 = vmatpush.msra.mxu0 0.0
    %1327 = vmatpush.msra.mxu0 0.0
    %1328 = vmatpush.msra.mxu0 0.0
    %1329 = vmatpush.msra.mxu0 0.0
    %1330 = vmatpush.msra.mxu0 0.0
    %1331 = vmatpush.msra.mxu0 0.0
    %1332 = vmatpush.msra.mxu0 0.0
    %1333 = vmatpush.msra.mxu0 0.0
    %1334 = vmatpush.msra.mxu0 0.0
    %1335 = vmatpush.msra.mxu0 0.0
    %1336 = vmatpush.msra.mxu0 0.0
    %1337 = vmatpush.msra.mxu0 %v1300
    %1338 = vmatmul.f32.gmra.mxu0 %v1294
    %v1339 = vpop.f32.mrf.mxu0
    %v1340 = vadd.f32 0.0, %v1339
    %1341 = vdwg.mxu0
    %v1343 = vsel %vm109, %v1278, 0
    %v1346 = vsel %vm113, %v1276, 0
    %v1349 = vsel %vm113, %v1277, 0
    %1351 = vmatpush.msra.mxu0 0.0
    %1352 = vmatpush.msra.mxu0 0.0
    %1353 = vmatpush.msra.mxu0 0.0
    %1354 = vmatpush.msra.mxu0 0.0
    %1355 = vmatpush.msra.mxu0 0.0
    %1356 = vmatpush.msra.mxu0 0.0
    %1357 = vmatpush.msra.mxu0 0.0
    %1358 = vmatpush.msra.mxu0 0.0
    %1359 = vmatpush.msra.mxu0 0.0
    %1360 = vmatpush.msra.mxu0 0.0
    %1361 = vmatpush.msra.mxu0 0.0
    %1362 = vmatpush.msra.mxu0 0.0
    %1363 = vmatpush.msra.mxu0 0.0
    %1364 = vmatpush.msra.mxu0 0.0
    %1365 = vmatpush.msra.mxu0 0.0
    %1366 = vmatpush.msra.mxu0 %v1346
    %1367 = vmatmul.f32.gmra.mxu0 %v1343
    %v1368 = vpop.f32.mrf.mxu0
    %v1369 = vadd.f32 %v1320, %v1368
    %1370 = vdwg.mxu0
    %1371 = vmatpush.msra.mxu0 0.0
    %1372 = vmatpush.msra.mxu0 0.0
    %1373 = vmatpush.msra.mxu0 0.0
    %1374 = vmatpush.msra.mxu0 0.0
    %1375 = vmatpush.msra.mxu0 0.0
    %1376 = vmatpush.msra.mxu0 0.0
    %1377 = vmatpush.msra.mxu0 0.0
    %1378 = vmatpush.msra.mxu0 0.0
    %1379 = vmatpush.msra.mxu0 0.0
    %1380 = vmatpush.msra.mxu0 0.0
    %1381 = vmatpush.msra.mxu0 0.0
    %1382 = vmatpush.msra.mxu0 0.0
    %1383 = vmatpush.msra.mxu0 0.0
    %1384 = vmatpush.msra.mxu0 0.0
    %1385 = vmatpush.msra.mxu0 0.0
    %1386 = vmatpush.msra.mxu0 %v1349
    %1387 = vmatmul.f32.gmra.mxu0 %v1343
    %v1388 = vpop.f32.mrf.mxu0
    %v1389 = vadd.f32 %v1340, %v1388
    %1390 = vdwg.mxu0
    %1391 = vst [vmem:[#allocation1] ss:$2 sm:$0xff] %v1263
    %v1392 = vld.sshfl [vmem:[#allocation1] sm:$0xff pattern:$0x75316420]
    %v1393 = vld.sshfl [vmem:[#allocation1 + $0x8] sm:$0xff pattern:$0x75316420]
    %1396 = vrot.lane.b32.xlu0 %v1392, 15
    %v1397 = vpop.permute.xlu0 %1396
    %1398 = vrot.lane.b32.xlu0 %v1393, 15
    %v1399 = vpop.permute.xlu0 %1398
    %v1400 = vsel %vm218, %v1397, %v1399
    %v1401 = vsel %vm218, %v1399, %v1397
    %v1402 = vsel %vm225, %v1401, 0.0
    %v1403 = vsel %vm226, %v1400, 0.0
    %v1404 = vld [vmem:[%s229] sm:$0xf]
    %v1406 = vsel %vm109, %v1404, 0
    %v1409 = vsel %vm113, %v1402, 0
    %v1412 = vsel %vm113, %v1403, 0
    %1414 = vmatpush.msra.mxu0 0.0
    %1415 = vmatpush.msra.mxu0 0.0
    %1416 = vmatpush.msra.mxu0 0.0
    %1417 = vmatpush.msra.mxu0 0.0
    %1418 = vmatpush.msra.mxu0 0.0
    %1419 = vmatpush.msra.mxu0 0.0
    %1420 = vmatpush.msra.mxu0 0.0
    %1421 = vmatpush.msra.mxu0 0.0
    %1422 = vmatpush.msra.mxu0 0.0
    %1423 = vmatpush.msra.mxu0 0.0
    %1424 = vmatpush.msra.mxu0 0.0
    %1425 = vmatpush.msra.mxu0 0.0
    %1426 = vmatpush.msra.mxu0 0.0
    %1427 = vmatpush.msra.mxu0 0.0
    %1428 = vmatpush.msra.mxu0 0.0
    %1429 = vmatpush.msra.mxu0 %v1409
    %1430 = vmatmul.f32.gmra.mxu0 %v1406
    %v1431 = vpop.f32.mrf.mxu0
    %v1432 = vadd.f32 0.0, %v1431
    %1433 = vdwg.mxu0
    %1434 = vmatpush.msra.mxu0 0.0
    %1435 = vmatpush.msra.mxu0 0.0
    %1436 = vmatpush.msra.mxu0 0.0
    %1437 = vmatpush.msra.mxu0 0.0
    %1438 = vmatpush.msra.mxu0 0.0
    %1439 = vmatpush.msra.mxu0 0.0
    %1440 = vmatpush.msra.mxu0 0.0
    %1441 = vmatpush.msra.mxu0 0.0
    %1442 = vmatpush.msra.mxu0 0.0
    %1443 = vmatpush.msra.mxu0 0.0
    %1444 = vmatpush.msra.mxu0 0.0
    %1445 = vmatpush.msra.mxu0 0.0
    %1446 = vmatpush.msra.mxu0 0.0
    %1447 = vmatpush.msra.mxu0 0.0
    %1448 = vmatpush.msra.mxu0 0.0
    %1449 = vmatpush.msra.mxu0 %v1412
    %1450 = vmatmul.f32.gmra.mxu0 %v1406
    %v1451 = vpop.f32.mrf.mxu0
    %v1452 = vadd.f32 0.0, %v1451
    %1453 = vdwg.mxu0
    %v1454 = vadd.f32 %v1369, %v1432
    %v1455 = vadd.f32 %v1389, %v1452
    %1456 = vst [vmem:[#allocation1] ss:$2 sm:$0xff] %v1263
    %v1457 = vld.sshfl [vmem:[#allocation1] sm:$0xff pattern:$0x75316420]
    %v1458 = vld.sshfl [vmem:[#allocation1 + $0x8] sm:$0xff pattern:$0x75316420]
    %1461 = vrot.lane.b32.xlu0 %v1457, 1
    %v1462 = vpop.permute.xlu0 %1461
    %1463 = vrot.lane.b32.xlu0 %v1458, 1
    %v1464 = vpop.permute.xlu0 %1463
    %v1465 = vsel %vm291, %v1462, %v1464
    %v1466 = vsel %vm291, %v1464, %v1462
    %v1467 = vsel %vm296, %v1466, 0.0
    %v1468 = vsel %vm296, %v1465, 0.0
    %v1469 = vld [vmem:[%s299] sm:$0xf]
    %v1471 = vsel %vm109, %v1469, 0
    %v1474 = vsel %vm113, %v1467, 0
    %v1477 = vsel %vm113, %v1468, 0
    %1479 = vmatpush.msra.mxu0 0.0
    %1480 = vmatpush.msra.mxu0 0.0
    %1481 = vmatpush.msra.mxu0 0.0
    %1482 = vmatpush.msra.mxu0 0.0
    %1483 = vmatpush.msra.mxu0 0.0
    %1484 = vmatpush.msra.mxu0 0.0
    %1485 = vmatpush.msra.mxu0 0.0
    %1486 = vmatpush.msra.mxu0 0.0
    %1487 = vmatpush.msra.mxu0 0.0
    %1488 = vmatpush.msra.mxu0 0.0
    %1489 = vmatpush.msra.mxu0 0.0
    %1490 = vmatpush.msra.mxu0 0.0
    %1491 = vmatpush.msra.mxu0 0.0
    %1492 = vmatpush.msra.mxu0 0.0
    %1493 = vmatpush.msra.mxu0 0.0
    %1494 = vmatpush.msra.mxu0 %v1474
    %1495 = vmatmul.f32.gmra.mxu0 %v1471
    %v1496 = vpop.f32.mrf.mxu0
    %v1497 = vadd.f32 0.0, %v1496
    %1498 = vdwg.mxu0
    %1499 = vmatpush.msra.mxu0 0.0
    %1500 = vmatpush.msra.mxu0 0.0
    %1501 = vmatpush.msra.mxu0 0.0
    %1502 = vmatpush.msra.mxu0 0.0
    %1503 = vmatpush.msra.mxu0 0.0
    %1504 = vmatpush.msra.mxu0 0.0
    %1505 = vmatpush.msra.mxu0 0.0
    %1506 = vmatpush.msra.mxu0 0.0
    %1507 = vmatpush.msra.mxu0 0.0
    %1508 = vmatpush.msra.mxu0 0.0
    %1509 = vmatpush.msra.mxu0 0.0
    %1510 = vmatpush.msra.mxu0 0.0
    %1511 = vmatpush.msra.mxu0 0.0
    %1512 = vmatpush.msra.mxu0 0.0
    %1513 = vmatpush.msra.mxu0 0.0
    %1514 = vmatpush.msra.mxu0 %v1477
    %1515 = vmatmul.f32.gmra.mxu0 %v1471
    %v1516 = vpop.f32.mrf.mxu0
    %v1517 = vadd.f32 0.0, %v1516
    %1518 = vdwg.mxu0
    %v1519 = vadd.f32 %v1454, %v1497
    %v1520 = vadd.f32 %v1455, %v1517
    %v1521 = vld [vmem:[%s352] sm:$0xf]
    %1522 = vst [vmem:[#allocation1] ss:$2 sm:$0xff] %v1263
    %v1523 = vld.sshfl [vmem:[#allocation1] sm:$0xff pattern:$0x75316420]
    %v1524 = vld.sshfl [vmem:[#allocation1 + $0x8] sm:$0xff pattern:$0x75316420]
    %v1526 = vsel %vm109, %v1521, 0
    %v1528 = vsel %vm113, %v1523, 0
    %v1530 = vsel %vm113, %v1524, 0
    %1532 = vmatpush.msra.mxu0 0.0
    %1533 = vmatpush.msra.mxu0 0.0
    %1534 = vmatpush.msra.mxu0 0.0
    %1535 = vmatpush.msra.mxu0 0.0
    %1536 = vmatpush.msra.mxu0 0.0
    %1537 = vmatpush.msra.mxu0 0.0
    %1538 = vmatpush.msra.mxu0 0.0
    %1539 = vmatpush.msra.mxu0 0.0
    %1540 = vmatpush.msra.mxu0 0.0
    %1541 = vmatpush.msra.mxu0 0.0
    %1542 = vmatpush.msra.mxu0 0.0
    %1543 = vmatpush.msra.mxu0 0.0
    %1544 = vmatpush.msra.mxu0 0.0
    %1545 = vmatpush.msra.mxu0 0.0
    %1546 = vmatpush.msra.mxu0 0.0
    %1547 = vmatpush.msra.mxu0 %v1528
    %1548 = vmatmul.f32.gmra.mxu0 %v1526
    %v1549 = vpop.f32.mrf.mxu0
    %v1550 = vadd.f32 0.0, %v1549
    %1551 = vdwg.mxu0
    %1552 = vmatpush.msra.mxu0 0.0
    %1553 = vmatpush.msra.mxu0 0.0
    %1554 = vmatpush.msra.mxu0 0.0
    %1555 = vmatpush.msra.mxu0 0.0
    %1556 = vmatpush.msra.mxu0 0.0
    %1557 = vmatpush.msra.mxu0 0.0
    %1558 = vmatpush.msra.mxu0 0.0
    %1559 = vmatpush.msra.mxu0 0.0
    %1560 = vmatpush.msra.mxu0 0.0
    %1561 = vmatpush.msra.mxu0 0.0
    %1562 = vmatpush.msra.mxu0 0.0
    %1563 = vmatpush.msra.mxu0 0.0
    %1564 = vmatpush.msra.mxu0 0.0
    %1565 = vmatpush.msra.mxu0 0.0
    %1566 = vmatpush.msra.mxu0 0.0
    %1567 = vmatpush.msra.mxu0 %v1530
    %1568 = vmatmul.f32.gmra.mxu0 %v1526
    %v1569 = vpop.f32.mrf.mxu0
    %v1570 = vadd.f32 0.0, %v1569
    %1571 = vdwg.mxu0
    %v1572 = vadd.f32 %v1519, %v1550
    %v1573 = vadd.f32 %v1520, %v1570
    %1574 = vst [vmem:[#allocation1] ss:$2 sm:$0xff] %v1263
    %v1575 = vld.sshfl [vmem:[#allocation1] sm:$0xff pattern:$0x75316420]
    %v1576 = vld.sshfl [vmem:[#allocation1 + $0x8] sm:$0xff pattern:$0x75316420]
    %1579 = vrot.lane.b32.xlu0 %v1575, 127
    %v1580 = vpop.permute.xlu0 %1579
    %1581 = vrot.lane.b32.xlu0 %v1576, 127
    %v1582 = vpop.permute.xlu0 %1581
    %v1583 = vsel %vm415, %v1580, %v1582
    %v1584 = vsel %vm415, %v1582, %v1580
    %v1585 = vsel %vm420, %v1583, 0.0
    %v1586 = vsel %vm420, %v1584, 0.0
    %v1587 = vld [vmem:[%s423] sm:$0xf]
    %v1589 = vsel %vm109, %v1587, 0
    %v1592 = vsel %vm113, %v1585, 0
    %v1595 = vsel %vm113, %v1586, 0
    %1597 = vmatpush.msra.mxu0 0.0
    %1598 = vmatpush.msra.mxu0 0.0
    %1599 = vmatpush.msra.mxu0 0.0
    %1600 = vmatpush.msra.mxu0 0.0
    %1601 = vmatpush.msra.mxu0 0.0
    %1602 = vmatpush.msra.mxu0 0.0
    %1603 = vmatpush.msra.mxu0 0.0
    %1604 = vmatpush.msra.mxu0 0.0
    %1605 = vmatpush.msra.mxu0 0.0
    %1606 = vmatpush.msra.mxu0 0.0
    %1607 = vmatpush.msra.mxu0 0.0
    %1608 = vmatpush.msra.mxu0 0.0
    %1609 = vmatpush.msra.mxu0 0.0
    %1610 = vmatpush.msra.mxu0 0.0
    %1611 = vmatpush.msra.mxu0 0.0
    %1612 = vmatpush.msra.mxu0 %v1592
    %1613 = vmatmul.f32.gmra.mxu0 %v1589
    %v1614 = vpop.f32.mrf.mxu0
    %v1615 = vadd.f32 0.0, %v1614
    %1616 = vdwg.mxu0
    %1617 = vmatpush.msra.mxu0 0.0
    %1618 = vmatpush.msra.mxu0 0.0
    %1619 = vmatpush.msra.mxu0 0.0
    %1620 = vmatpush.msra.mxu0 0.0
    %1621 = vmatpush.msra.mxu0 0.0
    %1622 = vmatpush.msra.mxu0 0.0
    %1623 = vmatpush.msra.mxu0 0.0
    %1624 = vmatpush.msra.mxu0 0.0
    %1625 = vmatpush.msra.mxu0 0.0
    %1626 = vmatpush.msra.mxu0 0.0
    %1627 = vmatpush.msra.mxu0 0.0
    %1628 = vmatpush.msra.mxu0 0.0
    %1629 = vmatpush.msra.mxu0 0.0
    %1630 = vmatpush.msra.mxu0 0.0
    %1631 = vmatpush.msra.mxu0 0.0
    %1632 = vmatpush.msra.mxu0 %v1595
    %1633 = vmatmul.f32.gmra.mxu0 %v1589
    %v1634 = vpop.f32.mrf.mxu0
    %v1635 = vadd.f32 0.0, %v1634
    %1636 = vdwg.mxu0
    %v1637 = vadd.f32 %v1572, %v1615
    %v1638 = vadd.f32 %v1573, %v1635
    %1639 = vst [vmem:[#allocation1] ss:$2 sm:$0xff] %v1263
    %v1640 = vld.sshfl [vmem:[#allocation1] sm:$0xff pattern:$0x75316420]
    %v1641 = vld.sshfl [vmem:[#allocation1 + $0x8] sm:$0xff pattern:$0x75316420]
    %1644 = vrot.lane.b32.xlu0 %v1640, 113
    %v1645 = vpop.permute.xlu0 %1644
    %1646 = vrot.lane.b32.xlu0 %v1641, 113
    %v1647 = vpop.permute.xlu0 %1646
    %v1648 = vsel %vm485, %v1645, %v1647
    %v1649 = vsel %vm485, %v1647, %v1645
    %v1650 = vsel %vm492, %v1648, 0.0
    %v1651 = vsel %vm493, %v1649, 0.0
    %v1652 = vld [vmem:[%s496] sm:$0xf]
    %v1654 = vsel %vm109, %v1652, 0
    %v1657 = vsel %vm113, %v1650, 0
    %v1660 = vsel %vm113, %v1651, 0
    %1662 = vmatpush.msra.mxu0 0.0
    %1663 = vmatpush.msra.mxu0 0.0
    %1664 = vmatpush.msra.mxu0 0.0
    %1665 = vmatpush.msra.mxu0 0.0
    %1666 = vmatpush.msra.mxu0 0.0
    %1667 = vmatpush.msra.mxu0 0.0
    %1668 = vmatpush.msra.mxu0 0.0
    %1669 = vmatpush.msra.mxu0 0.0
    %1670 = vmatpush.msra.mxu0 0.0
    %1671 = vmatpush.msra.mxu0 0.0
    %1672 = vmatpush.msra.mxu0 0.0
    %1673 = vmatpush.msra.mxu0 0.0
    %1674 = vmatpush.msra.mxu0 0.0
    %1675 = vmatpush.msra.mxu0 0.0
    %1676 = vmatpush.msra.mxu0 0.0
    %1677 = vmatpush.msra.mxu0 %v1657
    %1678 = vmatmul.f32.gmra.mxu0 %v1654
    %v1679 = vpop.f32.mrf.mxu0
    %v1680 = vadd.f32 0.0, %v1679
    %1681 = vdwg.mxu0
    %1682 = vmatpush.msra.mxu0 0.0
    %1683 = vmatpush.msra.mxu0 0.0
    %1684 = vmatpush.msra.mxu0 0.0
    %1685 = vmatpush.msra.mxu0 0.0
    %1686 = vmatpush.msra.mxu0 0.0
    %1687 = vmatpush.msra.mxu0 0.0
    %1688 = vmatpush.msra.mxu0 0.0
    %1689 = vmatpush.msra.mxu0 0.0
    %1690 = vmatpush.msra.mxu0 0.0
    %1691 = vmatpush.msra.mxu0 0.0
    %1692 = vmatpush.msra.mxu0 0.0
    %1693 = vmatpush.msra.mxu0 0.0
    %1694 = vmatpush.msra.mxu0 0.0
    %1695 = vmatpush.msra.mxu0 0.0
    %1696 = vmatpush.msra.mxu0 0.0
    %1697 = vmatpush.msra.mxu0 %v1660
    %1698 = vmatmul.f32.gmra.mxu0 %v1654
    %v1699 = vpop.f32.mrf.mxu0
    %v1700 = vadd.f32 0.0, %v1699
    %1701 = vdwg.mxu0
    %v1702 = vadd.f32 %v1637, %v1680
    %v1703 = vadd.f32 %v1638, %v1700
    %1704 = vst [vmem:[#allocation1] ss:$2 sm:$0xff] %v1263
    %v1705 = vld.sshfl [vmem:[#allocation1] sm:$0xff pattern:$0x75316420]
    %v1706 = vld.sshfl [vmem:[#allocation1 + $0x8] sm:$0xff pattern:$0x75316420]
    %1709 = vrot.lane.b32.xlu0 %v1705, 112
    %v1710 = vpop.permute.xlu0 %1709
    %1711 = vrot.lane.b32.xlu0 %v1706, 112
    %v1712 = vpop.permute.xlu0 %1711
    %v1713 = vsel %vm558, %v1710, %v1712
    %v1714 = vsel %vm558, %v1712, %v1710
    %v1715 = vsel %vm563, %v1713, 0.0
    %v1716 = vsel %vm564, %v1714, 0.0
    %v1717 = vld [vmem:[%s567] sm:$0xf]
    %v1719 = vsel %vm109, %v1717, 0
    %v1722 = vsel %vm113, %v1715, 0
    %v1725 = vsel %vm113, %v1716, 0
    %1727 = vmatpush.msra.mxu0 0.0
    %1728 = vmatpush.msra.mxu0 0.0
    %1729 = vmatpush.msra.mxu0 0.0
    %1730 = vmatpush.msra.mxu0 0.0
    %1731 = vmatpush.msra.mxu0 0.0
    %1732 = vmatpush.msra.mxu0 0.0
    %1733 = vmatpush.msra.mxu0 0.0
    %1734 = vmatpush.msra.mxu0 0.0
    %1735 = vmatpush.msra.mxu0 0.0
    %1736 = vmatpush.msra.mxu0 0.0
    %1737 = vmatpush.msra.mxu0 0.0
    %1738 = vmatpush.msra.mxu0 0.0
    %1739 = vmatpush.msra.mxu0 0.0
    %1740 = vmatpush.msra.mxu0 0.0
    %1741 = vmatpush.msra.mxu0 0.0
    %1742 = vmatpush.msra.mxu0 %v1722
    %1743 = vmatmul.f32.gmra.mxu0 %v1719
    %v1744 = vpop.f32.mrf.mxu0
    %v1745 = vadd.f32 0.0, %v1744
    %1746 = vdwg.mxu0
    %1747 = vmatpush.msra.mxu0 0.0
    %1748 = vmatpush.msra.mxu0 0.0
    %1749 = vmatpush.msra.mxu0 0.0
    %1750 = vmatpush.msra.mxu0 0.0
    %1751 = vmatpush.msra.mxu0 0.0
    %1752 = vmatpush.msra.mxu0 0.0
    %1753 = vmatpush.msra.mxu0 0.0
    %1754 = vmatpush.msra.mxu0 0.0
    %1755 = vmatpush.msra.mxu0 0.0
    %1756 = vmatpush.msra.mxu0 0.0
    %1757 = vmatpush.msra.mxu0 0.0
    %1758 = vmatpush.msra.mxu0 0.0
    %1759 = vmatpush.msra.mxu0 0.0
    %1760 = vmatpush.msra.mxu0 0.0
    %1761 = vmatpush.msra.mxu0 0.0
    %1762 = vmatpush.msra.mxu0 %v1725
    %1763 = vmatmul.f32.gmra.mxu0 %v1719
    %v1764 = vpop.f32.mrf.mxu0
    %v1765 = vadd.f32 0.0, %v1764
    %1766 = vdwg.mxu0
    %v1767 = vadd.f32 %v1702, %v1745
    %v1768 = vadd.f32 %v1703, %v1765
    %1769 = vst [vmem:[#allocation1] ss:$2 sm:$0xff] %v1263
    %v1770 = vld.sshfl [vmem:[#allocation1] sm:$0xff pattern:$0x75316420]
    %v1771 = vld.sshfl [vmem:[#allocation1 + $0x8] sm:$0xff pattern:$0x75316420]
    %1774 = vrot.lane.b32.xlu0 %v1770, 111
    %v1775 = vpop.permute.xlu0 %1774
    %1776 = vrot.lane.b32.xlu0 %v1771, 111
    %v1777 = vpop.permute.xlu0 %1776
    %v1778 = vsel %vm629, %v1775, %v1777
    %v1779 = vsel %vm629, %v1777, %v1775
    %v1780 = vsel %vm636, %v1778, 0.0
    %v1781 = vsel %vm637, %v1779, 0.0
    %v1782 = vld [vmem:[%s640] sm:$0xf]
    %v1784 = vsel %vm109, %v1782, 0
    %v1787 = vsel %vm113, %v1780, 0
    %v1790 = vsel %vm113, %v1781, 0
    %1792 = vmatpush.msra.mxu0 0.0
    %1793 = vmatpush.msra.mxu0 0.0
    %1794 = vmatpush.msra.mxu0 0.0
    %1795 = vmatpush.msra.mxu0 0.0
    %1796 = vmatpush.msra.mxu0 0.0
    %1797 = vmatpush.msra.mxu0 0.0
    %1798 = vmatpush.msra.mxu0 0.0
    %1799 = vmatpush.msra.mxu0 0.0
    %1800 = vmatpush.msra.mxu0 0.0
    %1801 = vmatpush.msra.mxu0 0.0
    %1802 = vmatpush.msra.mxu0 0.0
    %1803 = vmatpush.msra.mxu0 0.0
    %1804 = vmatpush.msra.mxu0 0.0
    %1805 = vmatpush.msra.mxu0 0.0
    %1806 = vmatpush.msra.mxu0 0.0
    %1807 = vmatpush.msra.mxu0 %v1787
    %1808 = vmatmul.f32.gmra.mxu0 %v1784
    %v1809 = vpop.f32.mrf.mxu0
    %v1810 = vadd.f32 0.0, %v1809
    %1811 = vdwg.mxu0
    %1812 = vmatpush.msra.mxu0 0.0
    %1813 = vmatpush.msra.mxu0 0.0
    %1814 = vmatpush.msra.mxu0 0.0
    %1815 = vmatpush.msra.mxu0 0.0
    %1816 = vmatpush.msra.mxu0 0.0
    %1817 = vmatpush.msra.mxu0 0.0
    %1818 = vmatpush.msra.mxu0 0.0
    %1819 = vmatpush.msra.mxu0 0.0
    %1820 = vmatpush.msra.mxu0 0.0
    %1821 = vmatpush.msra.mxu0 0.0
    %1822 = vmatpush.msra.mxu0 0.0
    %1823 = vmatpush.msra.mxu0 0.0
    %1824 = vmatpush.msra.mxu0 0.0
    %1825 = vmatpush.msra.mxu0 0.0
    %1826 = vmatpush.msra.mxu0 0.0
    %1827 = vmatpush.msra.mxu0 %v1790
    %1828 = vmatmul.f32.gmra.mxu0 %v1784
    %v1829 = vpop.f32.mrf.mxu0
    %v1830 = vadd.f32 0.0, %v1829
    %1831 = vdwg.mxu0
    %v1832 = vadd.f32 %v1767, %v1810
    %v1833 = vadd.f32 %v1768, %v1830
    %v1834 = vld [vmem:[%s2] sm:$0xf]
    %1836 = vset.pattern.permute.xlu0 0
    %1837 = vperm.xlu0 %1836, %v1834
    %v1838 = vpop.permute.xlu0 %1837
    %v1840 = vadd.f32 %v1832, %v1838
    %v1841 = vadd.f32 %v1833, %v1838
    %v1842 = vmax.f32 %v1840, 0.0
    %v1843 = vmax.f32 %v1841, 0.0
    %1844 = vrot.lane.b32.xlu0 %v1842, 17
    %v1845 = vpop.permute.xlu0 %1844
    %1846 = vrot.lane.b32.xlu0 %v1843, 17
    %v1847 = vpop.permute.xlu0 %1846
    %v1848 = vsel %vm77, %v1845, %v1847
    %v1849 = vsel %vm77, %v1847, %v1845
    %v1850 = vsel %vm84, %v1849, 0.0
    %v1851 = vsel %vm85, %v1848, 0.0
    %v1852 = vld [vmem:[%s3] sm:$0xf]
    %1853 = vrot.lane.b32.xlu0 %v1842, 16
    %v1854 = vpop.permute.xlu0 %1853
    %1855 = vrot.lane.b32.xlu0 %v1843, 16
    %v1856 = vpop.permute.xlu0 %1855
    %v1857 = vsel %vm98, %v1854, %v1856
    %v1858 = vsel %vm98, %v1856, %v1854
    %v1859 = vsel %vm103, %v1858, 0.0
    %v1860 = vsel %vm104, %v1857, 0.0
    %v1861 = vld [vmem:[%s720] sm:$0xf]
    %v1863 = vsel %vm109, %v1861, 0
    %v1866 = vsel %vm113, %v1859, 0
    %v1869 = vsel %vm113, %v1860, 0
    %1871 = vmatpush.msra.mxu0 0.0
    %1872 = vmatpush.msra.mxu0 0.0
    %1873 = vmatpush.msra.mxu0 0.0
    %1874 = vmatpush.msra.mxu0 0.0
    %1875 = vmatpush.msra.mxu0 0.0
    %1876 = vmatpush.msra.mxu0 0.0
    %1877 = vmatpush.msra.mxu0 0.0
    %1878 = vmatpush.msra.mxu0 0.0
    %1879 = vmatpush.msra.mxu0 0.0
    %1880 = vmatpush.msra.mxu0 0.0
    %1881 = vmatpush.msra.mxu0 0.0
    %1882 = vmatpush.msra.mxu0 0.0
    %1883 = vmatpush.msra.mxu0 0.0
    %1884 = vmatpush.msra.mxu0 0.0
    %1885 = vmatpush.msra.mxu0 0.0
    %1886 = vmatpush.msra.mxu0 %v1866
    %1887 = vmatmul.f32.gmra.mxu0 %v1863
    %v1888 = vpop.f32.mrf.mxu0
    %v1889 = vadd.f32 0.0, %v1888
    %1890 = vdwg.mxu0
    %1891 = vmatpush.msra.mxu0 0.0
    %1892 = vmatpush.msra.mxu0 0.0
    %1893 = vmatpush.msra.mxu0 0.0
    %1894 = vmatpush.msra.mxu0 0.0
    %1895 = vmatpush.msra.mxu0 0.0
    %1896 = vmatpush.msra.mxu0 0.0
    %1897 = vmatpush.msra.mxu0 0.0
    %1898 = vmatpush.msra.mxu0 0.0
    %1899 = vmatpush.msra.mxu0 0.0
    %1900 = vmatpush.msra.mxu0 0.0
    %1901 = vmatpush.msra.mxu0 0.0
    %1902 = vmatpush.msra.mxu0 0.0
    %1903 = vmatpush.msra.mxu0 0.0
    %1904 = vmatpush.msra.mxu0 0.0
    %1905 = vmatpush.msra.mxu0 0.0
    %1906 = vmatpush.msra.mxu0 %v1869
    %1907 = vmatmul.f32.gmra.mxu0 %v1863
    %v1908 = vpop.f32.mrf.mxu0
    %v1909 = vadd.f32 0.0, %v1908
    %1910 = vdwg.mxu0
    %v1912 = vsel %vm109, %v1852, 0
    %v1915 = vsel %vm113, %v1850, 0
    %v1918 = vsel %vm113, %v1851, 0
    %1920 = vmatpush.msra.mxu0 0.0
    %1921 = vmatpush.msra.mxu0 0.0
    %1922 = vmatpush.msra.mxu0 0.0
    %1923 = vmatpush.msra.mxu0 0.0
    %1924 = vmatpush.msra.mxu0 0.0
    %1925 = vmatpush.msra.mxu0 0.0
    %1926 = vmatpush.msra.mxu0 0.0
    %1927 = vmatpush.msra.mxu0 0.0
    %1928 = vmatpush.msra.mxu0 0.0
    %1929 = vmatpush.msra.mxu0 0.0
    %1930 = vmatpush.msra.mxu0 0.0
    %1931 = vmatpush.msra.mxu0 0.0
    %1932 = vmatpush.msra.mxu0 0.0
    %1933 = vmatpush.msra.mxu0 0.0
    %1934 = vmatpush.msra.mxu0 0.0
    %1935 = vmatpush.msra.mxu0 %v1915
    %1936 = vmatmul.f32.gmra.mxu0 %v1912
    %v1937 = vpop.f32.mrf.mxu0
    %v1938 = vadd.f32 %v1889, %v1937
    %1939 = vdwg.mxu0
    %1940 = vmatpush.msra.mxu0 0.0
    %1941 = vmatpush.msra.mxu0 0.0
    %1942 = vmatpush.msra.mxu0 0.0
    %1943 = vmatpush.msra.mxu0 0.0
    %1944 = vmatpush.msra.mxu0 0.0
    %1945 = vmatpush.msra.mxu0 0.0
    %1946 = vmatpush.msra.mxu0 0.0
    %1947 = vmatpush.msra.mxu0 0.0
    %1948 = vmatpush.msra.mxu0 0.0
    %1949 = vmatpush.msra.mxu0 0.0
    %1950 = vmatpush.msra.mxu0 0.0
    %1951 = vmatpush.msra.mxu0 0.0
    %1952 = vmatpush.msra.mxu0 0.0
    %1953 = vmatpush.msra.mxu0 0.0
    %1954 = vmatpush.msra.mxu0 0.0
    %1955 = vmatpush.msra.mxu0 %v1918
    %1956 = vmatmul.f32.gmra.mxu0 %v1912
    %v1957 = vpop.f32.mrf.mxu0
    %v1958 = vadd.f32 %v1909, %v1957
    %1959 = vdwg.mxu0
    %1960 = vrot.lane.b32.xlu0 %v1842, 15
    %v1961 = vpop.permute.xlu0 %1960
    %1962 = vrot.lane.b32.xlu0 %v1843, 15
    %v1963 = vpop.permute.xlu0 %1962
    %v1964 = vsel %vm218, %v1961, %v1963
    %v1965 = vsel %vm218, %v1963, %v1961
    %v1966 = vsel %vm225, %v1965, 0.0
    %v1967 = vsel %vm226, %v1964, 0.0
    %v1968 = vld [vmem:[%s828] sm:$0xf]
    %v1970 = vsel %vm109, %v1968, 0
    %v1973 = vsel %vm113, %v1966, 0
    %v1976 = vsel %vm113, %v1967, 0
    %1978 = vmatpush.msra.mxu0 0.0
    %1979 = vmatpush.msra.mxu0 0.0
    %1980 = vmatpush.msra.mxu0 0.0
    %1981 = vmatpush.msra.mxu0 0.0
    %1982 = vmatpush.msra.mxu0 0.0
    %1983 = vmatpush.msra.mxu0 0.0
    %1984 = vmatpush.msra.mxu0 0.0
    %1985 = vmatpush.msra.mxu0 0.0
    %1986 = vmatpush.msra.mxu0 0.0
    %1987 = vmatpush.msra.mxu0 0.0
    %1988 = vmatpush.msra.mxu0 0.0
    %1989 = vmatpush.msra.mxu0 0.0
    %1990 = vmatpush.msra.mxu0 0.0
    %1991 = vmatpush.msra.mxu0 0.0
    %1992 = vmatpush.msra.mxu0 0.0
    %1993 = vmatpush.msra.mxu0 %v1973
    %1994 = vmatmul.f32.gmra.mxu0 %v1970
    %v1995 = vpop.f32.mrf.mxu0
    %v1996 = vadd.f32 0.0, %v1995
    %1997 = vdwg.mxu0
    %1998 = vmatpush.msra.mxu0 0.0
    %1999 = vmatpush.msra.mxu0 0.0
    %2000 = vmatpush.msra.mxu0 0.0
    %2001 = vmatpush.msra.mxu0 0.0
    %2002 = vmatpush.msra.mxu0 0.0
    %2003 = vmatpush.msra.mxu0 0.0
    %2004 = vmatpush.msra.mxu0 0.0
    %2005 = vmatpush.msra.mxu0 0.0
    %2006 = vmatpush.msra.mxu0 0.0
    %2007 = vmatpush.msra.mxu0 0.0
    %2008 = vmatpush.msra.mxu0 0.0
    %2009 = vmatpush.msra.mxu0 0.0
    %2010 = vmatpush.msra.mxu0 0.0
    %2011 = vmatpush.msra.mxu0 0.0
    %2012 = vmatpush.msra.mxu0 0.0
    %2013 = vmatpush.msra.mxu0 %v1976
    %2014 = vmatmul.f32.gmra.mxu0 %v1970
    %v2015 = vpop.f32.mrf.mxu0
    %v2016 = vadd.f32 0.0, %v2015
    %2017 = vdwg.mxu0
    %v2018 = vadd.f32 %v1938, %v1996
    %v2019 = vadd.f32 %v1958, %v2016
    %2020 = vrot.lane.b32.xlu0 %v1842, 1
    %v2021 = vpop.permute.xlu0 %2020
    %2022 = vrot.lane.b32.xlu0 %v1843, 1
    %v2023 = vpop.permute.xlu0 %2022
    %v2024 = vsel %vm291, %v2021, %v2023
    %v2025 = vsel %vm291, %v2023, %v2021
    %v2026 = vsel %vm296, %v2025, 0.0
    %v2027 = vsel %vm296, %v2024, 0.0
    %v2028 = vld [vmem:[%s889] sm:$0xf]
    %v2030 = vsel %vm109, %v2028, 0
    %v2033 = vsel %vm113, %v2026, 0
    %v2036 = vsel %vm113, %v2027, 0
    %2038 = vmatpush.msra.mxu0 0.0
    %2039 = vmatpush.msra.mxu0 0.0
    %2040 = vmatpush.msra.mxu0 0.0
    %2041 = vmatpush.msra.mxu0 0.0
    %2042 = vmatpush.msra.mxu0 0.0
    %2043 = vmatpush.msra.mxu0 0.0
    %2044 = vmatpush.msra.mxu0 0.0
    %2045 = vmatpush.msra.mxu0 0.0
    %2046 = vmatpush.msra.mxu0 0.0
    %2047 = vmatpush.msra.mxu0 0.0
    %2048 = vmatpush.msra.mxu0 0.0
    %2049 = vmatpush.msra.mxu0 0.0
    %2050 = vmatpush.msra.mxu0 0.0
    %2051 = vmatpush.msra.mxu0 0.0
    %2052 = vmatpush.msra.mxu0 0.0
    %2053 = vmatpush.msra.mxu0 %v2033
    %2054 = vmatmul.f32.gmra.mxu0 %v2030
    %v2055 = vpop.f32.mrf.mxu0
    %v2056 = vadd.f32 0.0, %v2055
    %2057 = vdwg.mxu0
    %2058 = vmatpush.msra.mxu0 0.0
    %2059 = vmatpush.msra.mxu0 0.0
    %2060 = vmatpush.msra.mxu0 0.0
    %2061 = vmatpush.msra.mxu0 0.0
    %2062 = vmatpush.msra.mxu0 0.0
    %2063 = vmatpush.msra.mxu0 0.0
    %2064 = vmatpush.msra.mxu0 0.0
    %2065 = vmatpush.msra.mxu0 0.0
    %2066 = vmatpush.msra.mxu0 0.0
    %2067 = vmatpush.msra.mxu0 0.0
    %2068 = vmatpush.msra.mxu0 0.0
    %2069 = vmatpush.msra.mxu0 0.0
    %2070 = vmatpush.msra.mxu0 0.0
    %2071 = vmatpush.msra.mxu0 0.0
    %2072 = vmatpush.msra.mxu0 0.0
    %2073 = vmatpush.msra.mxu0 %v2036
    %2074 = vmatmul.f32.gmra.mxu0 %v2030
    %v2075 = vpop.f32.mrf.mxu0
    %v2076 = vadd.f32 0.0, %v2075
    %2077 = vdwg.mxu0
    %v2078 = vadd.f32 %v2018, %v2056
    %v2079 = vadd.f32 %v2019, %v2076
    %v2080 = vld [vmem:[%s942] sm:$0xf]
    %v2082 = vsel %vm109, %v2080, 0
    %v2085 = vsel %vm113, %v1842, 0
    %v2088 = vsel %vm113, %v1843, 0
    %2090 = vmatpush.msra.mxu0 0.0
    %2091 = vmatpush.msra.mxu0 0.0
    %2092 = vmatpush.msra.mxu0 0.0
    %2093 = vmatpush.msra.mxu0 0.0
    %2094 = vmatpush.msra.mxu0 0.0
    %2095 = vmatpush.msra.mxu0 0.0
    %2096 = vmatpush.msra.mxu0 0.0
    %2097 = vmatpush.msra.mxu0 0.0
    %2098 = vmatpush.msra.mxu0 0.0
    %2099 = vmatpush.msra.mxu0 0.0
    %2100 = vmatpush.msra.mxu0 0.0
    %2101 = vmatpush.msra.mxu0 0.0
    %2102 = vmatpush.msra.mxu0 0.0
    %2103 = vmatpush.msra.mxu0 0.0
    %2104 = vmatpush.msra.mxu0 0.0
    %2105 = vmatpush.msra.mxu0 %v2085
    %2106 = vmatmul.f32.gmra.mxu0 %v2082
    %v2107 = vpop.f32.mrf.mxu0
    %v2108 = vadd.f32 0.0, %v2107
    %2109 = vdwg.mxu0
    %2110 = vmatpush.msra.mxu0 0.0
    %2111 = vmatpush.msra.mxu0 0.0
    %2112 = vmatpush.msra.mxu0 0.0
    %2113 = vmatpush.msra.mxu0 0.0
    %2114 = vmatpush.msra.mxu0 0.0
    %2115 = vmatpush.msra.mxu0 0.0
    %2116 = vmatpush.msra.mxu0 0.0
    %2117 = vmatpush.msra.mxu0 0.0
    %2118 = vmatpush.msra.mxu0 0.0
    %2119 = vmatpush.msra.mxu0 0.0
    %2120 = vmatpush.msra.mxu0 0.0
    %2121 = vmatpush.msra.mxu0 0.0
    %2122 = vmatpush.msra.mxu0 0.0
    %2123 = vmatpush.msra.mxu0 0.0
    %2124 = vmatpush.msra.mxu0 0.0
    %2125 = vmatpush.msra.mxu0 %v2088
    %2126 = vmatmul.f32.gmra.mxu0 %v2082
    %v2127 = vpop.f32.mrf.mxu0
    %v2128 = vadd.f32 0.0, %v2127
    %2129 = vdwg.mxu0
    %v2130 = vadd.f32 %v2078, %v2108
    %v2131 = vadd.f32 %v2079, %v2128
    %2132 = vrot.lane.b32.xlu0 %v1842, 127
    %v2133 = vpop.permute.xlu0 %2132
    %2134 = vrot.lane.b32.xlu0 %v1843, 127
    %v2135 = vpop.permute.xlu0 %2134
    %v2136 = vsel %vm415, %v2133, %v2135
    %v2137 = vsel %vm415, %v2135, %v2133
    %v2138 = vsel %vm420, %v2136, 0.0
    %v2139 = vsel %vm420, %v2137, 0.0
    %v2140 = vld [vmem:[%s1003] sm:$0xf]
    %v2142 = vsel %vm109, %v2140, 0
    %v2145 = vsel %vm113, %v2138, 0
    %v2148 = vsel %vm113, %v2139, 0
    %2150 = vmatpush.msra.mxu0 0.0
    %2151 = vmatpush.msra.mxu0 0.0
    %2152 = vmatpush.msra.mxu0 0.0
    %2153 = vmatpush.msra.mxu0 0.0
    %2154 = vmatpush.msra.mxu0 0.0
    %2155 = vmatpush.msra.mxu0 0.0
    %2156 = vmatpush.msra.mxu0 0.0
    %2157 = vmatpush.msra.mxu0 0.0
    %2158 = vmatpush.msra.mxu0 0.0
    %2159 = vmatpush.msra.mxu0 0.0
    %2160 = vmatpush.msra.mxu0 0.0
    %2161 = vmatpush.msra.mxu0 0.0
    %2162 = vmatpush.msra.mxu0 0.0
    %2163 = vmatpush.msra.mxu0 0.0
    %2164 = vmatpush.msra.mxu0 0.0
    %2165 = vmatpush.msra.mxu0 %v2145
    %2166 = vmatmul.f32.gmra.mxu0 %v2142
    %v2167 = vpop.f32.mrf.mxu0
    %v2168 = vadd.f32 0.0, %v2167
    %2169 = vdwg.mxu0
    %2170 = vmatpush.msra.mxu0 0.0
    %2171 = vmatpush.msra.mxu0 0.0
    %2172 = vmatpush.msra.mxu0 0.0
    %2173 = vmatpush.msra.mxu0 0.0
    %2174 = vmatpush.msra.mxu0 0.0
    %2175 = vmatpush.msra.mxu0 0.0
    %2176 = vmatpush.msra.mxu0 0.0
    %2177 = vmatpush.msra.mxu0 0.0
    %2178 = vmatpush.msra.mxu0 0.0
    %2179 = vmatpush.msra.mxu0 0.0
    %2180 = vmatpush.msra.mxu0 0.0
    %2181 = vmatpush.msra.mxu0 0.0
    %2182 = vmatpush.msra.mxu0 0.0
    %2183 = vmatpush.msra.mxu0 0.0
    %2184 = vmatpush.msra.mxu0 0.0
    %2185 = vmatpush.msra.mxu0 %v2148
    %2186 = vmatmul.f32.gmra.mxu0 %v2142
    %v2187 = vpop.f32.mrf.mxu0
    %v2188 = vadd.f32 0.0, %v2187
    %2189 = vdwg.mxu0
    %v2190 = vadd.f32 %v2130, %v2168
    %v2191 = vadd.f32 %v2131, %v2188
    %2192 = vrot.lane.b32.xlu0 %v1842, 113
    %v2193 = vpop.permute.xlu0 %2192
    %2194 = vrot.lane.b32.xlu0 %v1843, 113
    %v2195 = vpop.permute.xlu0 %2194
    %v2196 = vsel %vm485, %v2193, %v2195
    %v2197 = vsel %vm485, %v2195, %v2193
    %v2198 = vsel %vm492, %v2196, 0.0
    %v2199 = vsel %vm493, %v2197, 0.0
    %v2200 = vld [vmem:[%s1064] sm:$0xf]
    %v2202 = vsel %vm109, %v2200, 0
    %v2205 = vsel %vm113, %v2198, 0
    %v2208 = vsel %vm113, %v2199, 0
    %2210 = vmatpush.msra.mxu0 0.0
    %2211 = vmatpush.msra.mxu0 0.0
    %2212 = vmatpush.msra.mxu0 0.0
    %2213 = vmatpush.msra.mxu0 0.0
    %2214 = vmatpush.msra.mxu0 0.0
    %2215 = vmatpush.msra.mxu0 0.0
    %2216 = vmatpush.msra.mxu0 0.0
    %2217 = vmatpush.msra.mxu0 0.0
    %2218 = vmatpush.msra.mxu0 0.0
    %2219 = vmatpush.msra.mxu0 0.0
    %2220 = vmatpush.msra.mxu0 0.0
    %2221 = vmatpush.msra.mxu0 0.0
    %2222 = vmatpush.msra.mxu0 0.0
    %2223 = vmatpush.msra.mxu0 0.0
    %2224 = vmatpush.msra.mxu0 0.0
    %2225 = vmatpush.msra.mxu0 %v2205
    %2226 = vmatmul.f32.gmra.mxu0 %v2202
    %v2227 = vpop.f32.mrf.mxu0
    %v2228 = vadd.f32 0.0, %v2227
    %2229 = vdwg.mxu0
    %2230 = vmatpush.msra.mxu0 0.0
    %2231 = vmatpush.msra.mxu0 0.0
    %2232 = vmatpush.msra.mxu0 0.0
    %2233 = vmatpush.msra.mxu0 0.0
    %2234 = vmatpush.msra.mxu0 0.0
    %2235 = vmatpush.msra.mxu0 0.0
    %2236 = vmatpush.msra.mxu0 0.0
    %2237 = vmatpush.msra.mxu0 0.0
    %2238 = vmatpush.msra.mxu0 0.0
    %2239 = vmatpush.msra.mxu0 0.0
    %2240 = vmatpush.msra.mxu0 0.0
    %2241 = vmatpush.msra.mxu0 0.0
    %2242 = vmatpush.msra.mxu0 0.0
    %2243 = vmatpush.msra.mxu0 0.0
    %2244 = vmatpush.msra.mxu0 0.0
    %2245 = vmatpush.msra.mxu0 %v2208
    %2246 = vmatmul.f32.gmra.mxu0 %v2202
    %v2247 = vpop.f32.mrf.mxu0
    %v2248 = vadd.f32 0.0, %v2247
    %2249 = vdwg.mxu0
    %v2250 = vadd.f32 %v2190, %v2228
    %v2251 = vadd.f32 %v2191, %v2248
    %2252 = vrot.lane.b32.xlu0 %v1842, 112
    %v2253 = vpop.permute.xlu0 %2252
    %2254 = vrot.lane.b32.xlu0 %v1843, 112
    %v2255 = vpop.permute.xlu0 %2254
    %v2256 = vsel %vm558, %v2253, %v2255
    %v2257 = vsel %vm558, %v2255, %v2253
    %v2258 = vsel %vm563, %v2256, 0.0
    %v2259 = vsel %vm564, %v2257, 0.0
    %v2260 = vld [vmem:[%s1125] sm:$0xf]
    %v2262 = vsel %vm109, %v2260, 0
    %v2265 = vsel %vm113, %v2258, 0
    %v2268 = vsel %vm113, %v2259, 0
    %2270 = vmatpush.msra.mxu0 0.0
    %2271 = vmatpush.msra.mxu0 0.0
    %2272 = vmatpush.msra.mxu0 0.0
    %2273 = vmatpush.msra.mxu0 0.0
    %2274 = vmatpush.msra.mxu0 0.0
    %2275 = vmatpush.msra.mxu0 0.0
    %2276 = vmatpush.msra.mxu0 0.0
    %2277 = vmatpush.msra.mxu0 0.0
    %2278 = vmatpush.msra.mxu0 0.0
    %2279 = vmatpush.msra.mxu0 0.0
    %2280 = vmatpush.msra.mxu0 0.0
    %2281 = vmatpush.msra.mxu0 0.0
    %2282 = vmatpush.msra.mxu0 0.0
    %2283 = vmatpush.msra.mxu0 0.0
    %2284 = vmatpush.msra.mxu0 0.0
    %2285 = vmatpush.msra.mxu0 %v2265
    %2286 = vmatmul.f32.gmra.mxu0 %v2262
    %v2287 = vpop.f32.mrf.mxu0
    %v2288 = vadd.f32 0.0, %v2287
    %2289 = vdwg.mxu0
    %2290 = vmatpush.msra.mxu0 0.0
    %2291 = vmatpush.msra.mxu0 0.0
    %2292 = vmatpush.msra.mxu0 0.0
    %2293 = vmatpush.msra.mxu0 0.0
    %2294 = vmatpush.msra.mxu0 0.0
    %2295 = vmatpush.msra.mxu0 0.0
    %2296 = vmatpush.msra.mxu0 0.0
    %2297 = vmatpush.msra.mxu0 0.0
    %2298 = vmatpush.msra.mxu0 0.0
    %2299 = vmatpush.msra.mxu0 0.0
    %2300 = vmatpush.msra.mxu0 0.0
    %2301 = vmatpush.msra.mxu0 0.0
    %2302 = vmatpush.msra.mxu0 0.0
    %2303 = vmatpush.msra.mxu0 0.0
    %2304 = vmatpush.msra.mxu0 0.0
    %2305 = vmatpush.msra.mxu0 %v2268
    %2306 = vmatmul.f32.gmra.mxu0 %v2262
    %v2307 = vpop.f32.mrf.mxu0
    %v2308 = vadd.f32 0.0, %v2307
    %2309 = vdwg.mxu0
    %v2310 = vadd.f32 %v2250, %v2288
    %v2311 = vadd.f32 %v2251, %v2308
    %2312 = vrot.lane.b32.xlu0 %v1842, 111
    %v2313 = vpop.permute.xlu0 %2312
    %2314 = vrot.lane.b32.xlu0 %v1843, 111
    %v2315 = vpop.permute.xlu0 %2314
    %v2316 = vsel %vm629, %v2313, %v2315
    %v2317 = vsel %vm629, %v2315, %v2313
    %v2318 = vsel %vm636, %v2316, 0.0
    %v2319 = vsel %vm637, %v2317, 0.0
    %v2320 = vld [vmem:[%s1186] sm:$0xf]
    %v2322 = vsel %vm109, %v2320, 0
    %v2325 = vsel %vm113, %v2318, 0
    %v2328 = vsel %vm113, %v2319, 0
    %2330 = vmatpush.msra.mxu0 0.0
    %2331 = vmatpush.msra.mxu0 0.0
    %2332 = vmatpush.msra.mxu0 0.0
    %2333 = vmatpush.msra.mxu0 0.0
    %2334 = vmatpush.msra.mxu0 0.0
    %2335 = vmatpush.msra.mxu0 0.0
    %2336 = vmatpush.msra.mxu0 0.0
    %2337 = vmatpush.msra.mxu0 0.0
    %2338 = vmatpush.msra.mxu0 0.0
    %2339 = vmatpush.msra.mxu0 0.0
    %2340 = vmatpush.msra.mxu0 0.0
    %2341 = vmatpush.msra.mxu0 0.0
    %2342 = vmatpush.msra.mxu0 0.0
    %2343 = vmatpush.msra.mxu0 0.0
    %2344 = vmatpush.msra.mxu0 0.0
    %2345 = vmatpush.msra.mxu0 %v2325
    %2346 = vmatmul.f32.gmra.mxu0 %v2322
    %v2347 = vpop.f32.mrf.mxu0
    %v2348 = vadd.f32 0.0, %v2347
    %2349 = vdwg.mxu0
    %2350 = vmatpush.msra.mxu0 0.0
    %2351 = vmatpush.msra.mxu0 0.0
    %2352 = vmatpush.msra.mxu0 0.0
    %2353 = vmatpush.msra.mxu0 0.0
    %2354 = vmatpush.msra.mxu0 0.0
    %2355 = vmatpush.msra.mxu0 0.0
    %2356 = vmatpush.msra.mxu0 0.0
    %2357 = vmatpush.msra.mxu0 0.0
    %2358 = vmatpush.msra.mxu0 0.0
    %2359 = vmatpush.msra.mxu0 0.0
    %2360 = vmatpush.msra.mxu0 0.0
    %2361 = vmatpush.msra.mxu0 0.0
    %2362 = vmatpush.msra.mxu0 0.0
    %2363 = vmatpush.msra.mxu0 0.0
    %2364 = vmatpush.msra.mxu0 0.0
    %2365 = vmatpush.msra.mxu0 %v2328
    %2366 = vmatmul.f32.gmra.mxu0 %v2322
    %v2367 = vpop.f32.mrf.mxu0
    %v2368 = vadd.f32 0.0, %v2367
    %2369 = vdwg.mxu0
    %v2370 = vadd.f32 %v2310, %v2348
    %v2371 = vadd.f32 %v2311, %v2368
    %v2372 = vld [vmem:[%s4] sm:$0xf]
    %2374 = vset.pattern.permute.xlu0 0
    %2375 = vperm.xlu0 %2374, %v2372
    %v2376 = vpop.permute.xlu0 %2375
    %v2378 = vadd.f32 %v2370, %v2376
    %v2379 = vadd.f32 %v2371, %v2376
    %v2380 = vmax.f32 %v2378, 0.0
    %v2381 = vmax.f32 %v2379, 0.0
    %2382 = vst [vmem:[#allocation1] ss:$2 sm:$0xff] %v1263
    %v2383 = vld.sshfl [vmem:[#allocation1] sm:$0xff pattern:$0x75316420]
    %v2384 = vld.sshfl [vmem:[#allocation1 + $0x8] sm:$0xff pattern:$0x75316420]
    %v2387 = vadd.f32 %v2380, %v2383
    %v2388 = vadd.f32 %v2381, %v2384
    %v2391 = vrot.slane %v2388, 4
    %v2392 = vsel %vm113, %v2387, %v2391
    %s2394 = scalar_lea.vmem [#allocation2], 8
    %2395 = vst [vmem:[%s2394] sm:$0xff] %v2392
    // Predicated region
    $region22: #{tpu_custom_call.1} parent=1 // pred_check
      _
    $region23: #{tpu_custom_call.1} parent=1 // pred_check_branch
      %2397 = sbr.rel (0) target = $region25
    $region24: #{tpu_custom_call.1} parent=1 // pred_region
      %2399 = vsyncadd [#allocation3], 0
      %s2400 = sshll.u32 [#allocation2], 4
      %s2401 = int_to_ptr.vmem [resolvable:$true] %s2400
      %s2402 = sshll.u32 %s5, 4
      %s2403 = int_to_ptr.hbm [resolvable:$true] %s2402
      %2408 = dma.vmem_to_hbm [thread:$0]  %s2401, 256, %s2403, [#allocation3], 128, 128, 8
    $region25: #{tpu_custom_call.1} parent=1 // pred_fallthru
      _
    // Predicated region
    $region26: #{tpu_custom_call.1} parent=1 // pred_check
      _
    $region27: #{tpu_custom_call.1} parent=1 // pred_check_branch
      %2410 = sbr.rel (0) target = $region29
    $region28: #{tpu_custom_call.1} parent=1 // pred_region
      %2412 = dma.done [#allocation3], 256
    $region29: #{tpu_custom_call.1} parent=1 // pred_fallthru
      _
    %2413 = vsyncpa [#allocation3], 1

</llo_original>
